<compile_context>
chip_gen: v6e
topology: v6e:2x2x1
jax: 0.10.0
libtpu: 0.0.40
codegen_flags: <defaults>
</compile_context>

<pallas_src>
import numpy as np
import jax
import jax.numpy as jnp
from jax import lax
from jax.experimental import pallas as pl
from jax.experimental.pallas import tpu as pltpu  # noqa: F401  (kept per template)


def _round_up(x, m):
    return (x + m - 1) // m * m


def _make_fused_kernel(N, PH, PW, QH, RW, Mp1, C1):
    """Fused two-ConvBlock kernel; all shape parameters are static (closure)."""
    # Start index, in the evens-then-odds permuted pooled axis, of the QH/QW
    # consecutive positions needed for a conv tap shift v in {0, 1, 2}.
    sh = (0, (PH + 1) // 2, 1)
    sw = (0, (PW + 1) // 2, 1)
    B2 = N * QH * RW          # rows per pool-offset block of the 2nd matmul

    def kernel(p1_ref, w1_ref, b1_ref, s1_ref, t1_ref,
               w2_ref, b2_ref, s2_ref, t2_ref, o_ref):
        # ---------------- ConvBlock 1: conv(2x2) as ONE bf16 MXU matmul ------
        # p1 rows fold (pool offset, batch, spatial) into M = 4*Mp1.
        z1 = jnp.dot(p1_ref[...], w1_ref[...],
                     preferred_element_type=jnp.float32)            # (4*Mp1, C1)
        # MaxPool2d(2,2): elementwise max over the 4 pool-offset row blocks
        # (8-aligned slices thanks to the Mp1 padding).
        m1 = jnp.maximum(jnp.maximum(z1[0 * Mp1:1 * Mp1], z1[1 * Mp1:2 * Mp1]),
                         jnp.maximum(z1[2 * Mp1:3 * Mp1], z1[3 * Mp1:4 * Mp1]))
        # Bias + ReLU hoisted out of the pool reduction (valid: +b and ReLU are
        # monotone).  Dropout2d: identity (inference).  BatchNorm2d: folded
        # eval-mode affine.
        y1 = jnp.maximum(m1 + b1_ref[...], 0.0) * s1_ref[...] + t1_ref[...]   # (Mp1, C1)

        # ---------------- ConvBlock 2: value-built im2col, NO scratch --------
        # y1 rows are (n, h', w') with the pooled axes stored evens-then-odds,
        # so every (pool offset, tap) run is a contiguous static slice of y1.
        # Runs are RW=8 rows (sublane-aligned); rows >= QW inside a run are
        # junk that only feeds output rows the wrapper discards.
        #   z2 = sum_t  T_t @ W2[t]     with T_t of shape (4*B2, C1)
        z2 = None
        for ikh in range(2):            # conv tap (rows)
            for ikw in range(2):        # conv tap (cols)
                t = ikh * 2 + ikw
                pieces = []
                for a in range(2):      # pool offset (rows)
                    for b in range(2):  # pool offset (cols)
                        for n in range(N):
                            for i in range(QH):
                                src = (n * PH * PW
                                       + (sh[a + ikh] + i) * PW + sw[b + ikw])
                                pieces.append(y1[src:src + RW, :])   # (RW, C1)
                tap = jnp.concatenate(pieces, axis=0)                # (4*B2, C1)
                d = jnp.dot(tap.astype(jnp.bfloat16),
                            w2_ref[t * C1:(t + 1) * C1, :],
                            preferred_element_type=jnp.float32)      # (4*B2, C2)
                z2 = d if z2 is None else z2 + d
        # MaxPool2d(2,2) over the 4 pool-offset row blocks (8-aligned).
        m2 = jnp.maximum(jnp.maximum(z2[0 * B2:1 * B2], z2[1 * B2:2 * B2]),
                         jnp.maximum(z2[2 * B2:3 * B2], z2[3 * B2:4 * B2]))
        y2 = jnp.maximum(m2 + b2_ref[...], 0.0) * s2_ref[...] + t2_ref[...]   # (B2, C2)

        # Lane-dense slab store (last dim = C2 = 64); the NCHW permute +
        # torch.nn.Flatten happen in the wrapper on ~12 KB (free XLA glue).
        o_ref[...] = y2.astype(o_ref.dtype)

    return kernel


def _block1_patches(x_nhwc, PH, PW, Mp1):
    """Pool-aware im2col for ConvBlock 1 (pure layout glue on a ~4 KB input).

    Rows are ordered [pool offset (dh,dw)][n][h'][w'] where h'/w' enumerate the
    PH x PW pooled grid reordered evens-then-odds; each pool-offset block is
    zero-padded to Mp1 rows so the kernel's pool-max slices stay 8-aligned and
    the block-2 gather's 8-row over-reads stay in bounds.
    Columns are the 2x2xCin conv taps in (ikh, ikw, cin) order.
    """
    N, H, W, C = x_nhwc.shape
    M1 = N * PH * PW
    blocks = []
    for dh in range(2):
        for dw in range(2):
            taps = []
            for ikh in range(2):
                for ikw in range(2):
                    r0, c0 = dh + ikh, dw + ikw
                    sl = x_nhwc[:, r0:r0 + 2 * PH:2, c0:c0 + 2 * PW:2, :]  # (N,PH,PW,C)
                    # evens-then-odds reorder of the pooled spatial axes
                    sl = jnp.concatenate([sl[:, 0::2], sl[:, 1::2]], axis=1)
                    sl = jnp.concatenate([sl[:, :, 0::2], sl[:, :, 1::2]], axis=2)
                    taps.append(sl)
            p = jnp.concatenate(taps, axis=-1).reshape(M1, 4 * C)
            blocks.append(jnp.pad(p, ((0, Mp1 - M1), (0, 0))))
    return jnp.concatenate(blocks, axis=0)                           # (4*Mp1, 4*C)


@jax.jit
def convnet_controller_forward(x_nchw, params):
    """Equivalent of ConvNetController.forward (eval semantics), one fused kernel."""
    x = jnp.transpose(x_nchw, (0, 2, 3, 1)).astype(jnp.float32)      # NCHW -> NHWC
    N, H, W, Cin = x.shape
    w1, w2 = params["w1"], params["w2"]
    C1, C2 = w1.shape[-1], w2.shape[-1]
    PH, PW = (H - 1) // 2, (W - 1) // 2          # conv1 (2x2 valid) then 2x2 pool
    QH, QW = (PH - 1) // 2, (PW - 1) // 2        # conv2 (2x2 valid) then 2x2 pool
    K1, K2 = 4 * Cin, 4 * C1
    RW = _round_up(QW, 8)                        # 8-row, sublane-aligned gather runs
    # block-2's gather reads y1 rows up to max_src + RW - 1; size Mp1 for that.
    max_src = (N - 1) * PH * PW + ((PH + 1) // 2 + QH - 1) * PW + (PW + 1) // 2
    Mp1 = _round_up(max(N * PH * PW, max_src + RW), 8)
    B2 = N * QH * RW

    # bf16 matmul operands (single-pass MXU), f32 accumulation & f32 epilogues.
    p1 = _block1_patches(x, PH, PW, Mp1).astype(jnp.bfloat16)        # (4*Mp1, K1)
    w1m = w1.reshape(K1, C1).astype(jnp.bfloat16)
    w2m = w2.reshape(K2, C2).astype(jnp.bfloat16)
    args = (p1, w1m,
            params["b1"].reshape(1, C1), params["scale1"].reshape(1, C1),
            params["shift1"].reshape(1, C1),
            w2m,
            params["b2"].reshape(1, C2), params["scale2"].reshape(1, C2),
            params["shift2"].reshape(1, C2))

    kernel = _make_fused_kernel(N, PH, PW, QH, RW, Mp1, C1)
    out = pl.pallas_call(
        kernel,
        out_shape=jax.ShapeDtypeStruct((B2, C2), jnp.float32),
    )(*args)
    # Rows are [n][i][run]; keep the first QW rows of every 8-row run, then do
    # the NCHW Flatten permute -- fused XLA glue on ~12 KB.
    y = out.reshape(N, QH, RW, C2)[:, :, :QW, :]                     # (N,QH,QW,C2)
    return jnp.transpose(y, (0, 3, 1, 2)).reshape(N, C2 * QH * QW)


# ---------------- pure-JAX reference (for correctness check) ----------------
def conv_block_ref(x_nhwc, w_hwio, b, scale, shift):
    conv = lax.conv_general_dilated(
        x_nhwc, w_hwio, window_strides=(1, 1), padding="VALID",
        dimension_numbers=("NHWC", "HWIO", "NHWC"),
        precision=lax.Precision.HIGHEST)
    act = jnp.maximum(conv + b.reshape(1, 1, 1, -1), 0.0)
    pooled = lax.reduce_window(act, -jnp.inf, lax.max,
                               (1, 2, 2, 1), (1, 2, 2, 1), "VALID")
    return pooled * scale.reshape(1, 1, 1, -1) + shift.reshape(1, 1, 1, -1)


if __name__ == "__main__":
    # num_inputs = 4 channels; num_layers is unused in forward.
    N, Cin, H, W = 2, 4, 16, 16
    eps = 1e-5

    key = jax.random.PRNGKey(0)
    ks = jax.random.split(key, 13)

    def bn_scale_shift(kg, kb, km, kv, c):
        gamma = 1.0 + 0.1 * jax.random.normal(kg, (c,), jnp.float32)
        beta = 0.1 * jax.random.normal(kb, (c,), jnp.float32)
        mean = 0.05 * jax.random.normal(km, (c,), jnp.float32)
        var = jax.random.uniform(kv, (c,), jnp.float32, minval=0.5, maxval=1.5)
        scale = gamma / jnp.sqrt(var + eps)
        shift = beta - mean * scale
        return scale, shift

    # ConvBlock 1: Conv2d(4, 32, (2, 2))
    w1 = jax.random.normal(ks[0], (2, 2, Cin, 32), jnp.float32) / np.sqrt(2 * 2 * Cin)
    b1 = 0.1 * jax.random.normal(ks[1], (32,), jnp.float32)
    scale1, shift1 = bn_scale_shift(ks[2], ks[3], ks[4], ks[5], 32)
    # ConvBlock 2: Conv2d(32, 64, (2, 2))
    w2 = jax.random.normal(ks[6], (2, 2, 32, 64), jnp.float32) / np.sqrt(2 * 2 * 32)
    b2 = 0.1 * jax.random.normal(ks[7], (64,), jnp.float32)
    scale2, shift2 = bn_scale_shift(ks[8], ks[9], ks[10], ks[11], 64)

    x = jax.random.normal(ks[12], (N, Cin, H, W), jnp.float32)       # NCHW input

    params = dict(w1=w1, b1=b1, scale1=scale1, shift1=shift1,
                  w2=w2, b2=b2, scale2=scale2, shift2=shift2)

    out = jax.block_until_ready(convnet_controller_forward(x, params))

    # Shape: 16x16 -> conv 15x15 -> pool 7x7 -> conv 6x6 -> pool 3x3; 64*3*3 = 576
    assert out.shape == (N, 64 * 3 * 3), out.shape

    # Reference: pure-JAX convs (f32, HIGHEST) with matmul inputs pre-rounded to
    # bf16, matching the kernel's single-pass bf16 MXU math (f32 accumulation).
    def q(a):
        return a.astype(jnp.bfloat16).astype(jnp.float32)

    xh = jnp.transpose(x, (0, 2, 3, 1))
    r1 = conv_block_ref(q(xh), q(w1), b1, scale1, shift1)
    r2 = conv_block_ref(q(r1), q(w2), b2, scale2, shift2)
    ref = jnp.transpose(r2, (0, 3, 1, 2)).reshape(N, -1)
    np.testing.assert_allclose(np.asarray(out), np.asarray(ref), rtol=5e-3, atol=5e-3)

    print("KERNEL_OK")
</pallas_src>

<mosaic_0001>
module attributes {stable_mosaic.version = 11 : i64} {
  func.func @kernel(%arg0: memref<416x16xbf16, #tpu.memory_space<vmem>>, %arg1: memref<16x32xbf16, #tpu.memory_space<vmem>>, %arg2: memref<1x32xf32, #tpu.memory_space<vmem>>, %arg3: memref<1x32xf32, #tpu.memory_space<vmem>>, %arg4: memref<1x32xf32, #tpu.memory_space<vmem>>, %arg5: memref<128x64xbf16, #tpu.memory_space<vmem>>, %arg6: memref<1x64xf32, #tpu.memory_space<vmem>>, %arg7: memref<1x64xf32, #tpu.memory_space<vmem>>, %arg8: memref<1x64xf32, #tpu.memory_space<vmem>>, %arg9: memref<48x64xf32, #tpu.memory_space<vmem>>) attributes {dimension_semantics = [], scalar_prefetch = 0 : i64, scratch_operands = 0 : i64, tpu.core_type = #tpu.core_type<tc>} {
    %c0 = arith.constant 0 : index
    %c0_0 = arith.constant 0 : index
    %0 = vector.load %arg0[%c0, %c0_0] : memref<416x16xbf16, #tpu.memory_space<vmem>>, vector<416x16xbf16>
    %c0_1 = arith.constant 0 : index
    %c0_2 = arith.constant 0 : index
    %1 = vector.load %arg1[%c0_1, %c0_2] : memref<16x32xbf16, #tpu.memory_space<vmem>>, vector<16x32xbf16>
    %cst = arith.constant dense<0.000000e+00> : vector<416x32xf32>
    %2 = tpu.matmul %0, %1, %cst {dimension_numbers = #tpu.dot_dimension_numbers<[1], [0], [0], [1], [0, 0, 1, 1], [], []>} : vector<416x16xbf16>, vector<16x32xbf16>, vector<416x32xf32> -> vector<416x32xf32>
    %3 = vector.extract_strided_slice %2 {offsets = [0, 0], sizes = [104, 32], strides = [1, 1]} : vector<416x32xf32> to vector<104x32xf32>
    %4 = vector.extract_strided_slice %2 {offsets = [104, 0], sizes = [104, 32], strides = [1, 1]} : vector<416x32xf32> to vector<104x32xf32>
    %5 = arith.maximumf %3, %4 : vector<104x32xf32>
    %6 = vector.extract_strided_slice %2 {offsets = [208, 0], sizes = [104, 32], strides = [1, 1]} : vector<416x32xf32> to vector<104x32xf32>
    %7 = vector.extract_strided_slice %2 {offsets = [312, 0], sizes = [104, 32], strides = [1, 1]} : vector<416x32xf32> to vector<104x32xf32>
    %8 = arith.maximumf %6, %7 : vector<104x32xf32>
    %9 = arith.maximumf %5, %8 : vector<104x32xf32>
    %c0_3 = arith.constant 0 : index
    %c0_4 = arith.constant 0 : index
    %10 = vector.load %arg2[%c0_3, %c0_4] : memref<1x32xf32, #tpu.memory_space<vmem>>, vector<1x32xf32>
    %11 = vector.broadcast %10 : vector<1x32xf32> to vector<104x32xf32>
    %12 = arith.addf %9, %11 : vector<104x32xf32>
    %cst_5 = arith.constant 0.000000e+00 : f32
    %13 = vector.broadcast %cst_5 : f32 to vector<104x32xf32>
    %14 = arith.maximumf %12, %13 : vector<104x32xf32>
    %c0_6 = arith.constant 0 : index
    %c0_7 = arith.constant 0 : index
    %15 = vector.load %arg3[%c0_6, %c0_7] : memref<1x32xf32, #tpu.memory_space<vmem>>, vector<1x32xf32>
    %16 = vector.broadcast %15 : vector<1x32xf32> to vector<104x32xf32>
    %17 = arith.mulf %14, %16 : vector<104x32xf32>
    %c0_8 = arith.constant 0 : index
    %c0_9 = arith.constant 0 : index
    %18 = vector.load %arg4[%c0_8, %c0_9] : memref<1x32xf32, #tpu.memory_space<vmem>>, vector<1x32xf32>
    %19 = vector.broadcast %18 : vector<1x32xf32> to vector<104x32xf32>
    %20 = arith.addf %17, %19 : vector<104x32xf32>
    %21 = vector.extract_strided_slice %20 {offsets = [0, 0], sizes = [8, 32], strides = [1, 1]} : vector<104x32xf32> to vector<8x32xf32>
    %22 = vector.extract_strided_slice %20 {offsets = [7, 0], sizes = [8, 32], strides = [1, 1]} : vector<104x32xf32> to vector<8x32xf32>
    %23 = vector.extract_strided_slice %20 {offsets = [14, 0], sizes = [8, 32], strides = [1, 1]} : vector<104x32xf32> to vector<8x32xf32>
    %24 = vector.extract_strided_slice %20 {offsets = [49, 0], sizes = [8, 32], strides = [1, 1]} : vector<104x32xf32> to vector<8x32xf32>
    %25 = vector.extract_strided_slice %20 {offsets = [56, 0], sizes = [8, 32], strides = [1, 1]} : vector<104x32xf32> to vector<8x32xf32>
    %26 = vector.extract_strided_slice %20 {offsets = [63, 0], sizes = [8, 32], strides = [1, 1]} : vector<104x32xf32> to vector<8x32xf32>
    %27 = vector.extract_strided_slice %20 {offsets = [4, 0], sizes = [8, 32], strides = [1, 1]} : vector<104x32xf32> to vector<8x32xf32>
    %28 = vector.extract_strided_slice %20 {offsets = [11, 0], sizes = [8, 32], strides = [1, 1]} : vector<104x32xf32> to vector<8x32xf32>
    %29 = vector.extract_strided_slice %20 {offsets = [18, 0], sizes = [8, 32], strides = [1, 1]} : vector<104x32xf32> to vector<8x32xf32>
    %30 = vector.extract_strided_slice %20 {offsets = [53, 0], sizes = [8, 32], strides = [1, 1]} : vector<104x32xf32> to vector<8x32xf32>
    %31 = vector.extract_strided_slice %20 {offsets = [60, 0], sizes = [8, 32], strides = [1, 1]} : vector<104x32xf32> to vector<8x32xf32>
    %32 = vector.extract_strided_slice %20 {offsets = [67, 0], sizes = [8, 32], strides = [1, 1]} : vector<104x32xf32> to vector<8x32xf32>
    %33 = vector.extract_strided_slice %20 {offsets = [28, 0], sizes = [8, 32], strides = [1, 1]} : vector<104x32xf32> to vector<8x32xf32>
    %34 = vector.extract_strided_slice %20 {offsets = [35, 0], sizes = [8, 32], strides = [1, 1]} : vector<104x32xf32> to vector<8x32xf32>
    %35 = vector.extract_strided_slice %20 {offsets = [42, 0], sizes = [8, 32], strides = [1, 1]} : vector<104x32xf32> to vector<8x32xf32>
    %36 = vector.extract_strided_slice %20 {offsets = [77, 0], sizes = [8, 32], strides = [1, 1]} : vector<104x32xf32> to vector<8x32xf32>
    %37 = vector.extract_strided_slice %20 {offsets = [84, 0], sizes = [8, 32], strides = [1, 1]} : vector<104x32xf32> to vector<8x32xf32>
    %38 = vector.extract_strided_slice %20 {offsets = [91, 0], sizes = [8, 32], strides = [1, 1]} : vector<104x32xf32> to vector<8x32xf32>
    %39 = vector.extract_strided_slice %20 {offsets = [32, 0], sizes = [8, 32], strides = [1, 1]} : vector<104x32xf32> to vector<8x32xf32>
    %40 = vector.extract_strided_slice %20 {offsets = [39, 0], sizes = [8, 32], strides = [1, 1]} : vector<104x32xf32> to vector<8x32xf32>
    %41 = vector.extract_strided_slice %20 {offsets = [46, 0], sizes = [8, 32], strides = [1, 1]} : vector<104x32xf32> to vector<8x32xf32>
    %42 = vector.extract_strided_slice %20 {offsets = [81, 0], sizes = [8, 32], strides = [1, 1]} : vector<104x32xf32> to vector<8x32xf32>
    %43 = vector.extract_strided_slice %20 {offsets = [88, 0], sizes = [8, 32], strides = [1, 1]} : vector<104x32xf32> to vector<8x32xf32>
    %44 = vector.extract_strided_slice %20 {offsets = [95, 0], sizes = [8, 32], strides = [1, 1]} : vector<104x32xf32> to vector<8x32xf32>
    %45 = tpu.concatenate %21, %22, %23, %24, %25, %26, %27, %28, %29, %30, %31, %32, %33, %34, %35, %36 in 0 : vector<8x32xf32>, vector<8x32xf32>, vector<8x32xf32>, vector<8x32xf32>, vector<8x32xf32>, vector<8x32xf32>, vector<8x32xf32>, vector<8x32xf32>, vector<8x32xf32>, vector<8x32xf32>, vector<8x32xf32>, vector<8x32xf32>, vector<8x32xf32>, vector<8x32xf32>, vector<8x32xf32>, vector<8x32xf32> -> vector<128x32xf32>
    %46 = tpu.concatenate %37, %38, %39, %40, %41, %42, %43, %44 in 0 : vector<8x32xf32>, vector<8x32xf32>, vector<8x32xf32>, vector<8x32xf32>, vector<8x32xf32>, vector<8x32xf32>, vector<8x32xf32>, vector<8x32xf32> -> vector<64x32xf32>
    %47 = tpu.concatenate %45, %46 in 0 : vector<128x32xf32>, vector<64x32xf32> -> vector<192x32xf32>
    %48 = arith.truncf %47 : vector<192x32xf32> to vector<192x32xbf16>
    %c0_10 = arith.constant 0 : index
    %c0_11 = arith.constant 0 : index
    %49 = vector.load %arg5[%c0_10, %c0_11] : memref<128x64xbf16, #tpu.memory_space<vmem>>, vector<32x64xbf16>
    %cst_12 = arith.constant dense<0.000000e+00> : vector<192x64xf32>
    %50 = tpu.matmul %48, %49, %cst_12 {dimension_numbers = #tpu.dot_dimension_numbers<[1], [0], [0], [1], [0, 0, 1, 1], [], []>} : vector<192x32xbf16>, vector<32x64xbf16>, vector<192x64xf32> -> vector<192x64xf32>
    %51 = vector.extract_strided_slice %20 {offsets = [4, 0], sizes = [8, 32], strides = [1, 1]} : vector<104x32xf32> to vector<8x32xf32>
    %52 = vector.extract_strided_slice %20 {offsets = [11, 0], sizes = [8, 32], strides = [1, 1]} : vector<104x32xf32> to vector<8x32xf32>
    %53 = vector.extract_strided_slice %20 {offsets = [18, 0], sizes = [8, 32], strides = [1, 1]} : vector<104x32xf32> to vector<8x32xf32>
    %54 = vector.extract_strided_slice %20 {offsets = [53, 0], sizes = [8, 32], strides = [1, 1]} : vector<104x32xf32> to vector<8x32xf32>
    %55 = vector.extract_strided_slice %20 {offsets = [60, 0], sizes = [8, 32], strides = [1, 1]} : vector<104x32xf32> to vector<8x32xf32>
    %56 = vector.extract_strided_slice %20 {offsets = [67, 0], sizes = [8, 32], strides = [1, 1]} : vector<104x32xf32> to vector<8x32xf32>
    %57 = vector.extract_strided_slice %20 {offsets = [1, 0], sizes = [8, 32], strides = [1, 1]} : vector<104x32xf32> to vector<8x32xf32>
    %58 = vector.extract_strided_slice %20 {offsets = [8, 0], sizes = [8, 32], strides = [1, 1]} : vector<104x32xf32> to vector<8x32xf32>
    %59 = vector.extract_strided_slice %20 {offsets = [15, 0], sizes = [8, 32], strides = [1, 1]} : vector<104x32xf32> to vector<8x32xf32>
    %60 = vector.extract_strided_slice %20 {offsets = [50, 0], sizes = [8, 32], strides = [1, 1]} : vector<104x32xf32> to vector<8x32xf32>
    %61 = vector.extract_strided_slice %20 {offsets = [57, 0], sizes = [8, 32], strides = [1, 1]} : vector<104x32xf32> to vector<8x32xf32>
    %62 = vector.extract_strided_slice %20 {offsets = [64, 0], sizes = [8, 32], strides = [1, 1]} : vector<104x32xf32> to vector<8x32xf32>
    %63 = vector.extract_strided_slice %20 {offsets = [32, 0], sizes = [8, 32], strides = [1, 1]} : vector<104x32xf32> to vector<8x32xf32>
    %64 = vector.extract_strided_slice %20 {offsets = [39, 0], sizes = [8, 32], strides = [1, 1]} : vector<104x32xf32> to vector<8x32xf32>
    %65 = vector.extract_strided_slice %20 {offsets = [46, 0], sizes = [8, 32], strides = [1, 1]} : vector<104x32xf32> to vector<8x32xf32>
    %66 = vector.extract_strided_slice %20 {offsets = [81, 0], sizes = [8, 32], strides = [1, 1]} : vector<104x32xf32> to vector<8x32xf32>
    %67 = vector.extract_strided_slice %20 {offsets = [88, 0], sizes = [8, 32], strides = [1, 1]} : vector<104x32xf32> to vector<8x32xf32>
    %68 = vector.extract_strided_slice %20 {offsets = [95, 0], sizes = [8, 32], strides = [1, 1]} : vector<104x32xf32> to vector<8x32xf32>
    %69 = vector.extract_strided_slice %20 {offsets = [29, 0], sizes = [8, 32], strides = [1, 1]} : vector<104x32xf32> to vector<8x32xf32>
    %70 = vector.extract_strided_slice %20 {offsets = [36, 0], sizes = [8, 32], strides = [1, 1]} : vector<104x32xf32> to vector<8x32xf32>
    %71 = vector.extract_strided_slice %20 {offsets = [43, 0], sizes = [8, 32], strides = [1, 1]} : vector<104x32xf32> to vector<8x32xf32>
    %72 = vector.extract_strided_slice %20 {offsets = [78, 0], sizes = [8, 32], strides = [1, 1]} : vector<104x32xf32> to vector<8x32xf32>
    %73 = vector.extract_strided_slice %20 {offsets = [85, 0], sizes = [8, 32], strides = [1, 1]} : vector<104x32xf32> to vector<8x32xf32>
    %74 = vector.extract_strided_slice %20 {offsets = [92, 0], sizes = [8, 32], strides = [1, 1]} : vector<104x32xf32> to vector<8x32xf32>
    %75 = tpu.concatenate %51, %52, %53, %54, %55, %56, %57, %58, %59, %60, %61, %62, %63, %64, %65, %66 in 0 : vector<8x32xf32>, vector<8x32xf32>, vector<8x32xf32>, vector<8x32xf32>, vector<8x32xf32>, vector<8x32xf32>, vector<8x32xf32>, vector<8x32xf32>, vector<8x32xf32>, vector<8x32xf32>, vector<8x32xf32>, vector<8x32xf32>, vector<8x32xf32>, vector<8x32xf32>, vector<8x32xf32>, vector<8x32xf32> -> vector<128x32xf32>
    %76 = tpu.concatenate %67, %68, %69, %70, %71, %72, %73, %74 in 0 : vector<8x32xf32>, vector<8x32xf32>, vector<8x32xf32>, vector<8x32xf32>, vector<8x32xf32>, vector<8x32xf32>, vector<8x32xf32>, vector<8x32xf32> -> vector<64x32xf32>
    %77 = tpu.concatenate %75, %76 in 0 : vector<128x32xf32>, vector<64x32xf32> -> vector<192x32xf32>
    %78 = arith.truncf %77 : vector<192x32xf32> to vector<192x32xbf16>
    %c32 = arith.constant 32 : index
    %c0_13 = arith.constant 0 : index
    %79 = vector.load %arg5[%c32, %c0_13] : memref<128x64xbf16, #tpu.memory_space<vmem>>, vector<32x64xbf16>
    %cst_14 = arith.constant dense<0.000000e+00> : vector<192x64xf32>
    %80 = tpu.matmul %78, %79, %cst_14 {dimension_numbers = #tpu.dot_dimension_numbers<[1], [0], [0], [1], [0, 0, 1, 1], [], []>} : vector<192x32xbf16>, vector<32x64xbf16>, vector<192x64xf32> -> vector<192x64xf32>
    %81 = arith.addf %50, %80 : vector<192x64xf32>
    %82 = vector.extract_strided_slice %20 {offsets = [28, 0], sizes = [8, 32], strides = [1, 1]} : vector<104x32xf32> to vector<8x32xf32>
    %83 = vector.extract_strided_slice %20 {offsets = [35, 0], sizes = [8, 32], strides = [1, 1]} : vector<104x32xf32> to vector<8x32xf32>
    %84 = vector.extract_strided_slice %20 {offsets = [42, 0], sizes = [8, 32], strides = [1, 1]} : vector<104x32xf32> to vector<8x32xf32>
    %85 = vector.extract_strided_slice %20 {offsets = [77, 0], sizes = [8, 32], strides = [1, 1]} : vector<104x32xf32> to vector<8x32xf32>
    %86 = vector.extract_strided_slice %20 {offsets = [84, 0], sizes = [8, 32], strides = [1, 1]} : vector<104x32xf32> to vector<8x32xf32>
    %87 = vector.extract_strided_slice %20 {offsets = [91, 0], sizes = [8, 32], strides = [1, 1]} : vector<104x32xf32> to vector<8x32xf32>
    %88 = vector.extract_strided_slice %20 {offsets = [32, 0], sizes = [8, 32], strides = [1, 1]} : vector<104x32xf32> to vector<8x32xf32>
    %89 = vector.extract_strided_slice %20 {offsets = [39, 0], sizes = [8, 32], strides = [1, 1]} : vector<104x32xf32> to vector<8x32xf32>
    %90 = vector.extract_strided_slice %20 {offsets = [46, 0], sizes = [8, 32], strides = [1, 1]} : vector<104x32xf32> to vector<8x32xf32>
    %91 = vector.extract_strided_slice %20 {offsets = [81, 0], sizes = [8, 32], strides = [1, 1]} : vector<104x32xf32> to vector<8x32xf32>
    %92 = vector.extract_strided_slice %20 {offsets = [88, 0], sizes = [8, 32], strides = [1, 1]} : vector<104x32xf32> to vector<8x32xf32>
    %93 = vector.extract_strided_slice %20 {offsets = [95, 0], sizes = [8, 32], strides = [1, 1]} : vector<104x32xf32> to vector<8x32xf32>
    %94 = vector.extract_strided_slice %20 {offsets = [7, 0], sizes = [8, 32], strides = [1, 1]} : vector<104x32xf32> to vector<8x32xf32>
    %95 = vector.extract_strided_slice %20 {offsets = [14, 0], sizes = [8, 32], strides = [1, 1]} : vector<104x32xf32> to vector<8x32xf32>
    %96 = vector.extract_strided_slice %20 {offsets = [21, 0], sizes = [8, 32], strides = [1, 1]} : vector<104x32xf32> to vector<8x32xf32>
    %97 = vector.extract_strided_slice %20 {offsets = [56, 0], sizes = [8, 32], strides = [1, 1]} : vector<104x32xf32> to vector<8x32xf32>
    %98 = vector.extract_strided_slice %20 {offsets = [63, 0], sizes = [8, 32], strides = [1, 1]} : vector<104x32xf32> to vector<8x32xf32>
    %99 = vector.extract_strided_slice %20 {offsets = [70, 0], sizes = [8, 32], strides = [1, 1]} : vector<104x32xf32> to vector<8x32xf32>
    %100 = vector.extract_strided_slice %20 {offsets = [11, 0], sizes = [8, 32], strides = [1, 1]} : vector<104x32xf32> to vector<8x32xf32>
    %101 = vector.extract_strided_slice %20 {offsets = [18, 0], sizes = [8, 32], strides = [1, 1]} : vector<104x32xf32> to vector<8x32xf32>
    %102 = vector.extract_strided_slice %20 {offsets = [25, 0], sizes = [8, 32], strides = [1, 1]} : vector<104x32xf32> to vector<8x32xf32>
    %103 = vector.extract_strided_slice %20 {offsets = [60, 0], sizes = [8, 32], strides = [1, 1]} : vector<104x32xf32> to vector<8x32xf32>
    %104 = vector.extract_strided_slice %20 {offsets = [67, 0], sizes = [8, 32], strides = [1, 1]} : vector<104x32xf32> to vector<8x32xf32>
    %105 = vector.extract_strided_slice %20 {offsets = [74, 0], sizes = [8, 32], strides = [1, 1]} : vector<104x32xf32> to vector<8x32xf32>
    %106 = tpu.concatenate %82, %83, %84, %85, %86, %87, %88, %89, %90, %91, %92, %93, %94, %95, %96, %97 in 0 : vector<8x32xf32>, vector<8x32xf32>, vector<8x32xf32>, vector<8x32xf32>, vector<8x32xf32>, vector<8x32xf32>, vector<8x32xf32>, vector<8x32xf32>, vector<8x32xf32>, vector<8x32xf32>, vector<8x32xf32>, vector<8x32xf32>, vector<8x32xf32>, vector<8x32xf32>, vector<8x32xf32>, vector<8x32xf32> -> vector<128x32xf32>
    %107 = tpu.concatenate %98, %99, %100, %101, %102, %103, %104, %105 in 0 : vector<8x32xf32>, vector<8x32xf32>, vector<8x32xf32>, vector<8x32xf32>, vector<8x32xf32>, vector<8x32xf32>, vector<8x32xf32>, vector<8x32xf32> -> vector<64x32xf32>
    %108 = tpu.concatenate %106, %107 in 0 : vector<128x32xf32>, vector<64x32xf32> -> vector<192x32xf32>
    %109 = arith.truncf %108 : vector<192x32xf32> to vector<192x32xbf16>
    %c64 = arith.constant 64 : index
    %c0_15 = arith.constant 0 : index
    %110 = vector.load %arg5[%c64, %c0_15] : memref<128x64xbf16, #tpu.memory_space<vmem>>, vector<32x64xbf16>
    %cst_16 = arith.constant dense<0.000000e+00> : vector<192x64xf32>
    %111 = tpu.matmul %109, %110, %cst_16 {dimension_numbers = #tpu.dot_dimension_numbers<[1], [0], [0], [1], [0, 0, 1, 1], [], []>} : vector<192x32xbf16>, vector<32x64xbf16>, vector<192x64xf32> -> vector<192x64xf32>
    %112 = arith.addf %81, %111 : vector<192x64xf32>
    %113 = vector.extract_strided_slice %20 {offsets = [32, 0], sizes = [8, 32], strides = [1, 1]} : vector<104x32xf32> to vector<8x32xf32>
    %114 = vector.extract_strided_slice %20 {offsets = [39, 0], sizes = [8, 32], strides = [1, 1]} : vector<104x32xf32> to vector<8x32xf32>
    %115 = vector.extract_strided_slice %20 {offsets = [46, 0], sizes = [8, 32], strides = [1, 1]} : vector<104x32xf32> to vector<8x32xf32>
    %116 = vector.extract_strided_slice %20 {offsets = [81, 0], sizes = [8, 32], strides = [1, 1]} : vector<104x32xf32> to vector<8x32xf32>
    %117 = vector.extract_strided_slice %20 {offsets = [88, 0], sizes = [8, 32], strides = [1, 1]} : vector<104x32xf32> to vector<8x32xf32>
    %118 = vector.extract_strided_slice %20 {offsets = [95, 0], sizes = [8, 32], strides = [1, 1]} : vector<104x32xf32> to vector<8x32xf32>
    %119 = vector.extract_strided_slice %20 {offsets = [29, 0], sizes = [8, 32], strides = [1, 1]} : vector<104x32xf32> to vector<8x32xf32>
    %120 = vector.extract_strided_slice %20 {offsets = [36, 0], sizes = [8, 32], strides = [1, 1]} : vector<104x32xf32> to vector<8x32xf32>
    %121 = vector.extract_strided_slice %20 {offsets = [43, 0], sizes = [8, 32], strides = [1, 1]} : vector<104x32xf32> to vector<8x32xf32>
    %122 = vector.extract_strided_slice %20 {offsets = [78, 0], sizes = [8, 32], strides = [1, 1]} : vector<104x32xf32> to vector<8x32xf32>
    %123 = vector.extract_strided_slice %20 {offsets = [85, 0], sizes = [8, 32], strides = [1, 1]} : vector<104x32xf32> to vector<8x32xf32>
    %124 = vector.extract_strided_slice %20 {offsets = [92, 0], sizes = [8, 32], strides = [1, 1]} : vector<104x32xf32> to vector<8x32xf32>
    %125 = vector.extract_strided_slice %20 {offsets = [11, 0], sizes = [8, 32], strides = [1, 1]} : vector<104x32xf32> to vector<8x32xf32>
    %126 = vector.extract_strided_slice %20 {offsets = [18, 0], sizes = [8, 32], strides = [1, 1]} : vector<104x32xf32> to vector<8x32xf32>
    %127 = vector.extract_strided_slice %20 {offsets = [25, 0], sizes = [8, 32], strides = [1, 1]} : vector<104x32xf32> to vector<8x32xf32>
    %128 = vector.extract_strided_slice %20 {offsets = [60, 0], sizes = [8, 32], strides = [1, 1]} : vector<104x32xf32> to vector<8x32xf32>
    %129 = vector.extract_strided_slice %20 {offsets = [67, 0], sizes = [8, 32], strides = [1, 1]} : vector<104x32xf32> to vector<8x32xf32>
    %130 = vector.extract_strided_slice %20 {offsets = [74, 0], sizes = [8, 32], strides = [1, 1]} : vector<104x32xf32> to vector<8x32xf32>
    %131 = vector.extract_strided_slice %20 {offsets = [8, 0], sizes = [8, 32], strides = [1, 1]} : vector<104x32xf32> to vector<8x32xf32>
    %132 = vector.extract_strided_slice %20 {offsets = [15, 0], sizes = [8, 32], strides = [1, 1]} : vector<104x32xf32> to vector<8x32xf32>
    %133 = vector.extract_strided_slice %20 {offsets = [22, 0], sizes = [8, 32], strides = [1, 1]} : vector<104x32xf32> to vector<8x32xf32>
    %134 = vector.extract_strided_slice %20 {offsets = [57, 0], sizes = [8, 32], strides = [1, 1]} : vector<104x32xf32> to vector<8x32xf32>
    %135 = vector.extract_strided_slice %20 {offsets = [64, 0], sizes = [8, 32], strides = [1, 1]} : vector<104x32xf32> to vector<8x32xf32>
    %136 = vector.extract_strided_slice %20 {offsets = [71, 0], sizes = [8, 32], strides = [1, 1]} : vector<104x32xf32> to vector<8x32xf32>
    %137 = tpu.concatenate %113, %114, %115, %116, %117, %118, %119, %120, %121, %122, %123, %124, %125, %126, %127, %128 in 0 : vector<8x32xf32>, vector<8x32xf32>, vector<8x32xf32>, vector<8x32xf32>, vector<8x32xf32>, vector<8x32xf32>, vector<8x32xf32>, vector<8x32xf32>, vector<8x32xf32>, vector<8x32xf32>, vector<8x32xf32>, vector<8x32xf32>, vector<8x32xf32>, vector<8x32xf32>, vector<8x32xf32>, vector<8x32xf32> -> vector<128x32xf32>
    %138 = tpu.concatenate %129, %130, %131, %132, %133, %134, %135, %136 in 0 : vector<8x32xf32>, vector<8x32xf32>, vector<8x32xf32>, vector<8x32xf32>, vector<8x32xf32>, vector<8x32xf32>, vector<8x32xf32>, vector<8x32xf32> -> vector<64x32xf32>
    %139 = tpu.concatenate %137, %138 in 0 : vector<128x32xf32>, vector<64x32xf32> -> vector<192x32xf32>
    %140 = arith.truncf %139 : vector<192x32xf32> to vector<192x32xbf16>
    %c96 = arith.constant 96 : index
    %c0_17 = arith.constant 0 : index
    %141 = vector.load %arg5[%c96, %c0_17] : memref<128x64xbf16, #tpu.memory_space<vmem>>, vector<32x64xbf16>
    %cst_18 = arith.constant dense<0.000000e+00> : vector<192x64xf32>
    %142 = tpu.matmul %140, %141, %cst_18 {dimension_numbers = #tpu.dot_dimension_numbers<[1], [0], [0], [1], [0, 0, 1, 1], [], []>} : vector<192x32xbf16>, vector<32x64xbf16>, vector<192x64xf32> -> vector<192x64xf32>
    %143 = arith.addf %112, %142 : vector<192x64xf32>
    %144 = vector.extract_strided_slice %143 {offsets = [0, 0], sizes = [48, 64], strides = [1, 1]} : vector<192x64xf32> to vector<48x64xf32>
    %145 = vector.extract_strided_slice %143 {offsets = [48, 0], sizes = [48, 64], strides = [1, 1]} : vector<192x64xf32> to vector<48x64xf32>
    %146 = arith.maximumf %144, %145 : vector<48x64xf32>
    %147 = vector.extract_strided_slice %143 {offsets = [96, 0], sizes = [48, 64], strides = [1, 1]} : vector<192x64xf32> to vector<48x64xf32>
    %148 = vector.extract_strided_slice %143 {offsets = [144, 0], sizes = [48, 64], strides = [1, 1]} : vector<192x64xf32> to vector<48x64xf32>
    %149 = arith.maximumf %147, %148 : vector<48x64xf32>
    %150 = arith.maximumf %146, %149 : vector<48x64xf32>
    %c0_19 = arith.constant 0 : index
    %c0_20 = arith.constant 0 : index
    %151 = vector.load %arg6[%c0_19, %c0_20] : memref<1x64xf32, #tpu.memory_space<vmem>>, vector<1x64xf32>
    %152 = vector.broadcast %151 : vector<1x64xf32> to vector<48x64xf32>
    %153 = arith.addf %150, %152 : vector<48x64xf32>
    %cst_21 = arith.constant 0.000000e+00 : f32
    %154 = vector.broadcast %cst_21 : f32 to vector<48x64xf32>
    %155 = arith.maximumf %153, %154 : vector<48x64xf32>
    %c0_22 = arith.constant 0 : index
    %c0_23 = arith.constant 0 : index
    %156 = vector.load %arg7[%c0_22, %c0_23] : memref<1x64xf32, #tpu.memory_space<vmem>>, vector<1x64xf32>
    %157 = vector.broadcast %156 : vector<1x64xf32> to vector<48x64xf32>
    %158 = arith.mulf %155, %157 : vector<48x64xf32>
    %c0_24 = arith.constant 0 : index
    %c0_25 = arith.constant 0 : index
    %159 = vector.load %arg8[%c0_24, %c0_25] : memref<1x64xf32, #tpu.memory_space<vmem>>, vector<1x64xf32>
    %160 = vector.broadcast %159 : vector<1x64xf32> to vector<48x64xf32>
    %161 = arith.addf %158, %160 : vector<48x64xf32>
    %c0_26 = arith.constant 0 : index
    %c0_27 = arith.constant 0 : index
    %162 = vector.load %arg9[%c0_26, %c0_27] : memref<48x64xf32, #tpu.memory_space<vmem>>, vector<48x64xf32>
    tpu.vector_store %arg9[%c0_26, %c0_27], %161 {strides = array<i32>} : memref<48x64xf32, #tpu.memory_space<vmem>>, vector<48x64xf32>,
    return
  }
}

</mosaic_0001>

<llo_original>
// kernel: convnet_controller_forward.1
$region0: #{convnet_controller_forward.1}
  #allocation0 [shape = 'u32[]', space=smem, size = 0x4, offset = 0x4, fixed_abs, tag = 'smem constant byte address 0x4 - core index']
  #allocation1 [shape = 'u32[144,128]{1,0:T(1,128)}', space=vmem, size = 0x12000, scoped, tag = 'internal scratch']
  %s0 = inlined_call_operand.vmem [shape: bf16[416,16], index: 0, kind: input, shape index: {}]
  %s1 = inlined_call_operand.vmem [shape: bf16[16,32], index: 1, kind: input, shape index: {}]
  %s2 = inlined_call_operand.vmem [shape: f32[1,32], index: 2, kind: input, shape index: {}]
  %s3 = inlined_call_operand.vmem [shape: f32[1,32], index: 3, kind: input, shape index: {}]
  %s4 = inlined_call_operand.vmem [shape: f32[1,32], index: 4, kind: input, shape index: {}]
  %s5 = inlined_call_operand.vmem [shape: bf16[128,64], index: 5, kind: input, shape index: {}]
  %s6 = inlined_call_operand.vmem [shape: f32[1,64], index: 6, kind: input, shape index: {}]
  %s7 = inlined_call_operand.vmem [shape: f32[1,64], index: 7, kind: input, shape index: {}]
  %s8 = inlined_call_operand.vmem [shape: f32[1,64], index: 8, kind: input, shape index: {}]
  %s9 = inlined_call_operand.vmem [shape: f32[48,64], index: 9, kind: output, shape index: {}]
  %s10 = sld [smem:[#allocation0]]
  $region46: #{convnet_controller_forward.1} parent=0
    _
  %s12 = ssub.s32 1, %s10
  %s13 = scalar_select 0, %s12, %s10
  // Predicated region
  $region2: #{convnet_controller_forward.1} parent=0 // pred_check
    _
  $region3: #{convnet_controller_forward.1} parent=0 // pred_check_branch
    %15 = sbr.rel (0) target = $region5
  $region4: #{convnet_controller_forward.1} parent=0 // pred_region
    _
  $region5: #{convnet_controller_forward.1} parent=0 // pred_fallthru
    _
  // Predicated region
  $region6: #{convnet_controller_forward.1} parent=0 // pred_check
    _
  $region7: #{convnet_controller_forward.1} parent=0 // pred_check_branch
    %17 = sbr.rel (0) target = $region9
  $region8: #{convnet_controller_forward.1} parent=0 // pred_region
    _
  $region9: #{convnet_controller_forward.1} parent=0 // pred_fallthru
    _
  // Predicated region
  $region10: #{convnet_controller_forward.1} parent=0 // pred_check
    _
  $region11: #{convnet_controller_forward.1} parent=0 // pred_check_branch
    %19 = sbr.rel (0) target = $region13
  $region12: #{convnet_controller_forward.1} parent=0 // pred_region
    _
  $region13: #{convnet_controller_forward.1} parent=0 // pred_fallthru
    _
  // Predicated region
  $region14: #{convnet_controller_forward.1} parent=0 // pred_check
    _
  $region15: #{convnet_controller_forward.1} parent=0 // pred_check_branch
    %21 = sbr.rel (0) target = $region17
  $region16: #{convnet_controller_forward.1} parent=0 // pred_region
    _
  $region17: #{convnet_controller_forward.1} parent=0 // pred_fallthru
    _
  // Predicated region
  $region18: #{convnet_controller_forward.1} parent=0 // pred_check
    _
  $region19: #{convnet_controller_forward.1} parent=0 // pred_check_branch
    %23 = sbr.rel (0) target = $region21
  $region20: #{convnet_controller_forward.1} parent=0 // pred_region
    _
  $region21: #{convnet_controller_forward.1} parent=0 // pred_fallthru
    _
  // Predicated region
  $region22: #{convnet_controller_forward.1} parent=0 // pred_check
    _
  $region23: #{convnet_controller_forward.1} parent=0 // pred_check_branch
    %25 = sbr.rel (0) target = $region25
  $region24: #{convnet_controller_forward.1} parent=0 // pred_region
    _
  $region25: #{convnet_controller_forward.1} parent=0 // pred_fallthru
    _
  // Predicated region
  $region26: #{convnet_controller_forward.1} parent=0 // pred_check
    _
  $region27: #{convnet_controller_forward.1} parent=0 // pred_check_branch
    %27 = sbr.rel (0) target = $region29
  $region28: #{convnet_controller_forward.1} parent=0 // pred_region
    _
  $region29: #{convnet_controller_forward.1} parent=0 // pred_fallthru
    _
  // Predicated region
  $region30: #{convnet_controller_forward.1} parent=0 // pred_check
    _
  $region31: #{convnet_controller_forward.1} parent=0 // pred_check_branch
    %29 = sbr.rel (0) target = $region33
  $region32: #{convnet_controller_forward.1} parent=0 // pred_region
    _
  $region33: #{convnet_controller_forward.1} parent=0 // pred_fallthru
    _
  // Predicated region
  $region34: #{convnet_controller_forward.1} parent=0 // pred_check
    _
  $region35: #{convnet_controller_forward.1} parent=0 // pred_check_branch
    %31 = sbr.rel (0) target = $region37
  $region36: #{convnet_controller_forward.1} parent=0 // pred_region
    _
  $region37: #{convnet_controller_forward.1} parent=0 // pred_fallthru
    _
  %v33 = vld [vmem:[%s0] sm:$0xf]
  %v34 = vld [vmem:[%s0 + $0x4] sm:$0xf]
  %v35 = vld [vmem:[%s0 + $0x8] sm:$0xf]
  %v36 = vld [vmem:[%s0 + $0xc] sm:$0xf]
  %v37 = vld [vmem:[%s0 + $0x10] sm:$0xf]
  %v38 = vld [vmem:[%s0 + $0x14] sm:$0xf]
  %v39 = vld [vmem:[%s0 + $0x18] sm:$0xf]
  %v40 = vld [vmem:[%s0 + $0x1c] sm:$0xf]
  %v41 = vld [vmem:[%s0 + $0x20] sm:$0xf]
  %v42 = vld [vmem:[%s0 + $0x24] sm:$0xf]
  %v43 = vld [vmem:[%s0 + $0x28] sm:$0xf]
  %v44 = vld [vmem:[%s0 + $0x2c] sm:$0xf]
  %v45 = vld [vmem:[%s0 + $0x30] sm:$0xf]
  %v46 = vld [vmem:[%s0 + $0x34] sm:$0xf]
  %v47 = vld [vmem:[%s0 + $0x38] sm:$0xf]
  %v48 = vld [vmem:[%s0 + $0x3c] sm:$0xf]
  %v49 = vld [vmem:[%s0 + $0x40] sm:$0xf]
  %v50 = vld [vmem:[%s0 + $0x44] sm:$0xf]
  %v51 = vld [vmem:[%s0 + $0x48] sm:$0xf]
  %v52 = vld [vmem:[%s0 + $0x4c] sm:$0xf]
  %v53 = vld [vmem:[%s0 + $0x50] sm:$0xf]
  %v54 = vld [vmem:[%s0 + $0x54] sm:$0xf]
  %v55 = vld [vmem:[%s0 + $0x58] sm:$0xf]
  %v56 = vld [vmem:[%s0 + $0x5c] sm:$0xf]
  %v57 = vld [vmem:[%s0 + $0x60] sm:$0xf]
  %v58 = vld [vmem:[%s0 + $0x64] sm:$0xf]
  %v59 = vld [vmem:[%s0 + $0x68] sm:$0xf]
  %v60 = vld [vmem:[%s0 + $0x6c] sm:$0xf]
  %v61 = vld [vmem:[%s0 + $0x70] sm:$0xf]
  %v62 = vld [vmem:[%s0 + $0x74] sm:$0xf]
  %v63 = vld [vmem:[%s0 + $0x78] sm:$0xf]
  %v64 = vld [vmem:[%s0 + $0x7c] sm:$0xf]
  %v65 = vld [vmem:[%s0 + $0x80] sm:$0xf]
  %v66 = vld [vmem:[%s0 + $0x84] sm:$0xf]
  %v67 = vld [vmem:[%s0 + $0x88] sm:$0xf]
  %v68 = vld [vmem:[%s0 + $0x8c] sm:$0xf]
  %v69 = vld [vmem:[%s0 + $0x90] sm:$0xf]
  %v70 = vld [vmem:[%s0 + $0x94] sm:$0xf]
  %v71 = vld [vmem:[%s0 + $0x98] sm:$0xf]
  %v72 = vld [vmem:[%s0 + $0x9c] sm:$0xf]
  %v73 = vld [vmem:[%s0 + $0xa0] sm:$0xf]
  %v74 = vld [vmem:[%s0 + $0xa4] sm:$0xf]
  %v75 = vld [vmem:[%s0 + $0xa8] sm:$0xf]
  %v76 = vld [vmem:[%s0 + $0xac] sm:$0xf]
  %v77 = vld [vmem:[%s0 + $0xb0] sm:$0xf]
  %v78 = vld [vmem:[%s0 + $0xb4] sm:$0xf]
  %v79 = vld [vmem:[%s0 + $0xb8] sm:$0xf]
  %v80 = vld [vmem:[%s0 + $0xbc] sm:$0xf]
  %v81 = vld [vmem:[%s0 + $0xc0] sm:$0xf]
  %v82 = vld [vmem:[%s0 + $0xc4] sm:$0xf]
  %v83 = vld [vmem:[%s0 + $0xc8] sm:$0xf]
  %v84 = vld [vmem:[%s0 + $0xcc] sm:$0xf]
  %v85 = vld [vmem:[%s1] sm:$0xf]
  %v86 = vld [vmem:[%s1 + $0x4] sm:$0xf]
  %v139 = vunpack.c.l.b16 %v33
  %v140 = vunpack.c.l.b16 %v34
  %v141 = vunpack.c.l.b16 %v35
  %v142 = vunpack.c.l.b16 %v36
  %v143 = vunpack.c.l.b16 %v37
  %v144 = vunpack.c.l.b16 %v38
  %v145 = vunpack.c.l.b16 %v39
  %v146 = vunpack.c.l.b16 %v40
  %v147 = vunpack.c.l.b16 %v41
  %v148 = vunpack.c.l.b16 %v42
  %v149 = vunpack.c.l.b16 %v43
  %v150 = vunpack.c.l.b16 %v44
  %v151 = vunpack.c.l.b16 %v45
  %v152 = vunpack.c.l.b16 %v46
  %v153 = vunpack.c.l.b16 %v47
  %v154 = vunpack.c.l.b16 %v48
  %v155 = vunpack.c.l.b16 %v49
  %v156 = vunpack.c.l.b16 %v50
  %v157 = vunpack.c.l.b16 %v51
  %v158 = vunpack.c.l.b16 %v52
  %v159 = vunpack.c.l.b16 %v53
  %v160 = vunpack.c.l.b16 %v54
  %v161 = vunpack.c.l.b16 %v55
  %v162 = vunpack.c.l.b16 %v56
  %v163 = vunpack.c.l.b16 %v57
  %v164 = vunpack.c.l.b16 %v58
  %v165 = vunpack.c.l.b16 %v59
  %v166 = vunpack.c.l.b16 %v60
  %v167 = vunpack.c.l.b16 %v61
  %v168 = vunpack.c.l.b16 %v62
  %v169 = vunpack.c.l.b16 %v63
  %v170 = vunpack.c.l.b16 %v64
  %v171 = vunpack.c.l.b16 %v65
  %v172 = vunpack.c.l.b16 %v66
  %v173 = vunpack.c.l.b16 %v67
  %v174 = vunpack.c.l.b16 %v68
  %v175 = vunpack.c.l.b16 %v69
  %v176 = vunpack.c.l.b16 %v70
  %v177 = vunpack.c.l.b16 %v71
  %v178 = vunpack.c.l.b16 %v72
  %v179 = vunpack.c.l.b16 %v73
  %v180 = vunpack.c.l.b16 %v74
  %v181 = vunpack.c.l.b16 %v75
  %v182 = vunpack.c.l.b16 %v76
  %v183 = vunpack.c.l.b16 %v77
  %v184 = vunpack.c.l.b16 %v78
  %v185 = vunpack.c.l.b16 %v79
  %v186 = vunpack.c.l.b16 %v80
  %v187 = vunpack.c.l.b16 %v81
  %v188 = vunpack.c.l.b16 %v82
  %v189 = vunpack.c.l.b16 %v83
  %v190 = vunpack.c.l.b16 %v84
  %v191 = vpack.c.b16 %v140, %v139
  %v192 = vpack.c.b16 %v142, %v141
  %v193 = vpack.c.b16 %v144, %v143
  %v194 = vpack.c.b16 %v146, %v145
  %v195 = vpack.c.b16 %v148, %v147
  %v196 = vpack.c.b16 %v150, %v149
  %v197 = vpack.c.b16 %v152, %v151
  %v198 = vpack.c.b16 %v154, %v153
  %v199 = vpack.c.b16 %v156, %v155
  %v200 = vpack.c.b16 %v158, %v157
  %v201 = vpack.c.b16 %v160, %v159
  %v202 = vpack.c.b16 %v162, %v161
  %v203 = vpack.c.b16 %v164, %v163
  %v204 = vpack.c.b16 %v166, %v165
  %v205 = vpack.c.b16 %v168, %v167
  %v206 = vpack.c.b16 %v170, %v169
  %v207 = vpack.c.b16 %v172, %v171
  %v208 = vpack.c.b16 %v174, %v173
  %v209 = vpack.c.b16 %v176, %v175
  %v210 = vpack.c.b16 %v178, %v177
  %v211 = vpack.c.b16 %v180, %v179
  %v212 = vpack.c.b16 %v182, %v181
  %v213 = vpack.c.b16 %v184, %v183
  %v214 = vpack.c.b16 %v186, %v185
  %v215 = vpack.c.b16 %v188, %v187
  %v216 = vpack.c.b16 %v190, %v189
  %v219 = vunpack.c.l.b16 %v85
  %v220 = vunpack.c.l.b16 %v86
  %v221 = vpack.c.b16 %v220, %v219
  %vm223 = vcmask 130048
  %v225 = vsel %vm223, %v191, 0
  %v228 = vsel %vm223, %v192, 0
  %v231 = vsel %vm223, %v193, 0
  %v234 = vsel %vm223, %v194, 0
  %v237 = vsel %vm223, %v195, 0
  %v240 = vsel %vm223, %v196, 0
  %v243 = vsel %vm223, %v197, 0
  %v246 = vsel %vm223, %v198, 0
  %v249 = vsel %vm223, %v199, 0
  %v252 = vsel %vm223, %v200, 0
  %v255 = vsel %vm223, %v201, 0
  %v258 = vsel %vm223, %v202, 0
  %v261 = vsel %vm223, %v203, 0
  %v264 = vsel %vm223, %v204, 0
  %v267 = vsel %vm223, %v205, 0
  %v270 = vsel %vm223, %v206, 0
  %v273 = vsel %vm223, %v207, 0
  %v276 = vsel %vm223, %v208, 0
  %v279 = vsel %vm223, %v209, 0
  %v282 = vsel %vm223, %v210, 0
  %v285 = vsel %vm223, %v211, 0
  %v288 = vsel %vm223, %v212, 0
  %v291 = vsel %vm223, %v213, 0
  %v294 = vsel %vm223, %v214, 0
  %v297 = vsel %vm223, %v215, 0
  %v300 = vsel %vm223, %v216, 0
  %302 = vmatprep.subr.bf16.mxu0 0
  %303 = vmatpush1.bf16.msra.mxu0 0
  %304 = vmatprep.subr.bf16.mxu0 0
  %305 = vmatpush1.bf16.msra.mxu0 0
  %306 = vmatprep.subr.bf16.mxu0 0
  %307 = vmatpush1.bf16.msra.mxu0 0
  %308 = vmatprep.subr.bf16.mxu0 0
  %309 = vmatpush1.bf16.msra.mxu0 0
  %310 = vmatprep.subr.bf16.mxu0 0
  %311 = vmatpush1.bf16.msra.mxu0 0
  %312 = vmatprep.subr.bf16.mxu0 0
  %313 = vmatpush1.bf16.msra.mxu0 0
  %314 = vmatprep.subr.bf16.mxu0 0
  %315 = vmatpush1.bf16.msra.mxu0 0
  %316 = vmatprep.subr.bf16.mxu0 0
  %317 = vmatpush1.bf16.msra.mxu0 %v221
  %318 = vmatprep.subr.bf16.mxu0 0
  %319 = vmatpush2.bf16.msra.mxu0 0
  %320 = vmatprep.subr.bf16.mxu0 0
  %321 = vmatpush2.bf16.msra.mxu0 0
  %322 = vmatprep.subr.bf16.mxu0 0
  %323 = vmatpush2.bf16.msra.mxu0 0
  %324 = vmatprep.subr.bf16.mxu0 0
  %325 = vmatpush2.bf16.msra.mxu0 0
  %326 = vmatprep.subr.bf16.mxu0 0
  %327 = vmatpush2.bf16.msra.mxu0 0
  %328 = vmatprep.subr.bf16.mxu0 0
  %329 = vmatpush2.bf16.msra.mxu0 0
  %330 = vmatprep.subr.bf16.mxu0 0
  %331 = vmatpush2.bf16.msra.mxu0 0
  %332 = vmatprep.subr.bf16.mxu0 0
  %333 = vmatpush2.bf16.msra.mxu0 0
  %334 = vmatprep.mubr.bf16.mxu0 0
  %335 = vmatmul.mubr.bf16.gmra.mxu0 %v225
  %v336 = vpop.f32.mrf.mxu0
  %v337 = vadd.f32 0.0, %v336
  %v338 = vpop.f32.mrf.mxu0
  %v339 = vpop.f32.mrf.mxu0
  %v340 = vadd.f32 0.0, %v339
  %v341 = vpop.f32.mrf.mxu0
  %342 = vmatprep.mubr.bf16.mxu0 0
  %343 = vmatmul.mubr.bf16.gmra.mxu0 %v228
  %v344 = vpop.f32.mrf.mxu0
  %v345 = vadd.f32 0.0, %v344
  %v346 = vpop.f32.mrf.mxu0
  %v347 = vpop.f32.mrf.mxu0
  %v348 = vadd.f32 0.0, %v347
  %v349 = vpop.f32.mrf.mxu0
  %350 = vmatprep.mubr.bf16.mxu0 0
  %351 = vmatmul.mubr.bf16.gmra.mxu0 %v231
  %v352 = vpop.f32.mrf.mxu0
  %v353 = vadd.f32 0.0, %v352
  %v354 = vpop.f32.mrf.mxu0
  %v355 = vpop.f32.mrf.mxu0
  %v356 = vadd.f32 0.0, %v355
  %v357 = vpop.f32.mrf.mxu0
  %358 = vmatprep.mubr.bf16.mxu0 0
  %359 = vmatmul.mubr.bf16.gmra.mxu0 %v234
  %v360 = vpop.f32.mrf.mxu0
  %v361 = vadd.f32 0.0, %v360
  %v362 = vpop.f32.mrf.mxu0
  %v363 = vpop.f32.mrf.mxu0
  %v364 = vadd.f32 0.0, %v363
  %v365 = vpop.f32.mrf.mxu0
  %366 = vmatprep.mubr.bf16.mxu0 0
  %367 = vmatmul.mubr.bf16.gmra.mxu0 %v237
  %v368 = vpop.f32.mrf.mxu0
  %v369 = vadd.f32 0.0, %v368
  %v370 = vpop.f32.mrf.mxu0
  %v371 = vpop.f32.mrf.mxu0
  %v372 = vadd.f32 0.0, %v371
  %v373 = vpop.f32.mrf.mxu0
  %374 = vmatprep.mubr.bf16.mxu0 0
  %375 = vmatmul.mubr.bf16.gmra.mxu0 %v240
  %v376 = vpop.f32.mrf.mxu0
  %v377 = vadd.f32 0.0, %v376
  %v378 = vpop.f32.mrf.mxu0
  %v379 = vpop.f32.mrf.mxu0
  %v380 = vadd.f32 0.0, %v379
  %v381 = vpop.f32.mrf.mxu0
  %382 = vmatprep.mubr.bf16.mxu0 0
  %383 = vmatmul.mubr.bf16.gmra.mxu0 %v243
  %v384 = vpop.f32.mrf.mxu0
  %v385 = vadd.f32 0.0, %v384
  %v386 = vpop.f32.mrf.mxu0
  %v387 = vpop.f32.mrf.mxu0
  %v388 = vadd.f32 0.0, %v387
  %v389 = vpop.f32.mrf.mxu0
  %390 = vmatprep.mubr.bf16.mxu0 0
  %391 = vmatmul.mubr.bf16.gmra.mxu0 %v246
  %v392 = vpop.f32.mrf.mxu0
  %v393 = vadd.f32 0.0, %v392
  %v394 = vpop.f32.mrf.mxu0
  %v395 = vpop.f32.mrf.mxu0
  %v396 = vadd.f32 0.0, %v395
  %v397 = vpop.f32.mrf.mxu0
  %398 = vmatprep.mubr.bf16.mxu0 0
  %399 = vmatmul.mubr.bf16.gmra.mxu0 %v249
  %v400 = vpop.f32.mrf.mxu0
  %v401 = vadd.f32 0.0, %v400
  %v402 = vpop.f32.mrf.mxu0
  %v403 = vpop.f32.mrf.mxu0
  %v404 = vadd.f32 0.0, %v403
  %v405 = vpop.f32.mrf.mxu0
  %406 = vmatprep.mubr.bf16.mxu0 0
  %407 = vmatmul.mubr.bf16.gmra.mxu0 %v252
  %v408 = vpop.f32.mrf.mxu0
  %v409 = vadd.f32 0.0, %v408
  %v410 = vpop.f32.mrf.mxu0
  %v411 = vpop.f32.mrf.mxu0
  %v412 = vadd.f32 0.0, %v411
  %v413 = vpop.f32.mrf.mxu0
  %414 = vmatprep.mubr.bf16.mxu0 0
  %415 = vmatmul.mubr.bf16.gmra.mxu0 %v255
  %v416 = vpop.f32.mrf.mxu0
  %v417 = vadd.f32 0.0, %v416
  %v418 = vpop.f32.mrf.mxu0
  %v419 = vpop.f32.mrf.mxu0
  %v420 = vadd.f32 0.0, %v419
  %v421 = vpop.f32.mrf.mxu0
  %422 = vmatprep.mubr.bf16.mxu0 0
  %423 = vmatmul.mubr.bf16.gmra.mxu0 %v258
  %v424 = vpop.f32.mrf.mxu0
  %v425 = vadd.f32 0.0, %v424
  %v426 = vpop.f32.mrf.mxu0
  %v427 = vpop.f32.mrf.mxu0
  %v428 = vadd.f32 0.0, %v427
  %v429 = vpop.f32.mrf.mxu0
  %430 = vmatprep.mubr.bf16.mxu0 0
  %431 = vmatmul.mubr.bf16.gmra.mxu0 %v261
  %v432 = vpop.f32.mrf.mxu0
  %v433 = vadd.f32 0.0, %v432
  %v434 = vpop.f32.mrf.mxu0
  %v435 = vpop.f32.mrf.mxu0
  %v436 = vadd.f32 0.0, %v435
  %v437 = vpop.f32.mrf.mxu0
  %438 = vmatprep.mubr.bf16.mxu0 0
  %439 = vmatmul.mubr.bf16.gmra.mxu0 %v264
  %v440 = vpop.f32.mrf.mxu0
  %v441 = vadd.f32 0.0, %v440
  %v442 = vpop.f32.mrf.mxu0
  %v443 = vpop.f32.mrf.mxu0
  %v444 = vadd.f32 0.0, %v443
  %v445 = vpop.f32.mrf.mxu0
  %446 = vmatprep.mubr.bf16.mxu0 0
  %447 = vmatmul.mubr.bf16.gmra.mxu0 %v267
  %v448 = vpop.f32.mrf.mxu0
  %v449 = vadd.f32 0.0, %v448
  %v450 = vpop.f32.mrf.mxu0
  %v451 = vpop.f32.mrf.mxu0
  %v452 = vadd.f32 0.0, %v451
  %v453 = vpop.f32.mrf.mxu0
  %454 = vmatprep.mubr.bf16.mxu0 0
  %455 = vmatmul.mubr.bf16.gmra.mxu0 %v270
  %v456 = vpop.f32.mrf.mxu0
  %v457 = vadd.f32 0.0, %v456
  %v458 = vpop.f32.mrf.mxu0
  %v459 = vpop.f32.mrf.mxu0
  %v460 = vadd.f32 0.0, %v459
  %v461 = vpop.f32.mrf.mxu0
  %462 = vmatprep.mubr.bf16.mxu0 0
  %463 = vmatmul.mubr.bf16.gmra.mxu0 %v273
  %v464 = vpop.f32.mrf.mxu0
  %v465 = vadd.f32 0.0, %v464
  %v466 = vpop.f32.mrf.mxu0
  %v467 = vpop.f32.mrf.mxu0
  %v468 = vadd.f32 0.0, %v467
  %v469 = vpop.f32.mrf.mxu0
  %470 = vmatprep.mubr.bf16.mxu0 0
  %471 = vmatmul.mubr.bf16.gmra.mxu0 %v276
  %v472 = vpop.f32.mrf.mxu0
  %v473 = vadd.f32 0.0, %v472
  %v474 = vpop.f32.mrf.mxu0
  %v475 = vpop.f32.mrf.mxu0
  %v476 = vadd.f32 0.0, %v475
  %v477 = vpop.f32.mrf.mxu0
  %478 = vmatprep.mubr.bf16.mxu0 0
  %479 = vmatmul.mubr.bf16.gmra.mxu0 %v279
  %v480 = vpop.f32.mrf.mxu0
  %v481 = vadd.f32 0.0, %v480
  %v482 = vpop.f32.mrf.mxu0
  %v483 = vpop.f32.mrf.mxu0
  %v484 = vadd.f32 0.0, %v483
  %v485 = vpop.f32.mrf.mxu0
  %486 = vmatprep.mubr.bf16.mxu0 0
  %487 = vmatmul.mubr.bf16.gmra.mxu0 %v282
  %v488 = vpop.f32.mrf.mxu0
  %v489 = vadd.f32 0.0, %v488
  %v490 = vpop.f32.mrf.mxu0
  %v491 = vpop.f32.mrf.mxu0
  %v492 = vadd.f32 0.0, %v491
  %v493 = vpop.f32.mrf.mxu0
  %494 = vmatprep.mubr.bf16.mxu0 0
  %495 = vmatmul.mubr.bf16.gmra.mxu0 %v285
  %v496 = vpop.f32.mrf.mxu0
  %v497 = vadd.f32 0.0, %v496
  %v498 = vpop.f32.mrf.mxu0
  %v499 = vpop.f32.mrf.mxu0
  %v500 = vadd.f32 0.0, %v499
  %v501 = vpop.f32.mrf.mxu0
  %502 = vmatprep.mubr.bf16.mxu0 0
  %503 = vmatmul.mubr.bf16.gmra.mxu0 %v288
  %v504 = vpop.f32.mrf.mxu0
  %v505 = vadd.f32 0.0, %v504
  %v506 = vpop.f32.mrf.mxu0
  %v507 = vpop.f32.mrf.mxu0
  %v508 = vadd.f32 0.0, %v507
  %v509 = vpop.f32.mrf.mxu0
  %510 = vmatprep.mubr.bf16.mxu0 0
  %511 = vmatmul.mubr.bf16.gmra.mxu0 %v291
  %v512 = vpop.f32.mrf.mxu0
  %v513 = vadd.f32 0.0, %v512
  %v514 = vpop.f32.mrf.mxu0
  %v515 = vpop.f32.mrf.mxu0
  %v516 = vadd.f32 0.0, %v515
  %v517 = vpop.f32.mrf.mxu0
  %518 = vmatprep.mubr.bf16.mxu0 0
  %519 = vmatmul.mubr.bf16.gmra.mxu0 %v294
  %v520 = vpop.f32.mrf.mxu0
  %v521 = vadd.f32 0.0, %v520
  %v522 = vpop.f32.mrf.mxu0
  %v523 = vpop.f32.mrf.mxu0
  %v524 = vadd.f32 0.0, %v523
  %v525 = vpop.f32.mrf.mxu0
  %526 = vmatprep.mubr.bf16.mxu0 0
  %527 = vmatmul.mubr.bf16.gmra.mxu0 %v297
  %v528 = vpop.f32.mrf.mxu0
  %v529 = vadd.f32 0.0, %v528
  %v530 = vpop.f32.mrf.mxu0
  %v531 = vpop.f32.mrf.mxu0
  %v532 = vadd.f32 0.0, %v531
  %v533 = vpop.f32.mrf.mxu0
  %534 = vmatprep.mubr.bf16.mxu0 0
  %535 = vmatmul.mubr.bf16.gmra.mxu0 %v300
  %v536 = vpop.f32.mrf.mxu0
  %v537 = vadd.f32 0.0, %v536
  %v538 = vpop.f32.mrf.mxu0
  %v539 = vpop.f32.mrf.mxu0
  %v540 = vadd.f32 0.0, %v539
  %v541 = vpop.f32.mrf.mxu0
  %542 = vdwg.mxu0
  %v543 = vmax.f32 %v337, %v388
  %v544 = vmax.f32 %v340, %v393
  %v545 = vmax.f32 %v345, %v396
  %v546 = vmax.f32 %v348, %v401
  %v547 = vmax.f32 %v353, %v404
  %v548 = vmax.f32 %v356, %v409
  %v549 = vmax.f32 %v361, %v412
  %v550 = vmax.f32 %v364, %v417
  %v551 = vmax.f32 %v369, %v420
  %v552 = vmax.f32 %v372, %v425
  %v553 = vmax.f32 %v377, %v428
  %v554 = vmax.f32 %v380, %v433
  %v555 = vmax.f32 %v385, %v436
  %v556 = vmax.f32 %v441, %v492
  %v557 = vmax.f32 %v444, %v497
  %v558 = vmax.f32 %v449, %v500
  %v559 = vmax.f32 %v452, %v505
  %v560 = vmax.f32 %v457, %v508
  %v561 = vmax.f32 %v460, %v513
  %v562 = vmax.f32 %v465, %v516
  %v563 = vmax.f32 %v468, %v521
  %v564 = vmax.f32 %v473, %v524
  %v565 = vmax.f32 %v476, %v529
  %v566 = vmax.f32 %v481, %v532
  %v567 = vmax.f32 %v484, %v537
  %v568 = vmax.f32 %v489, %v540
  %v569 = vmax.f32 %v543, %v556
  %v570 = vmax.f32 %v544, %v557
  %v571 = vmax.f32 %v545, %v558
  %v572 = vmax.f32 %v546, %v559
  %v573 = vmax.f32 %v547, %v560
  %v574 = vmax.f32 %v548, %v561
  %v575 = vmax.f32 %v549, %v562
  %v576 = vmax.f32 %v550, %v563
  %v577 = vmax.f32 %v551, %v564
  %v578 = vmax.f32 %v552, %v565
  %v579 = vmax.f32 %v553, %v566
  %v580 = vmax.f32 %v554, %v567
  %v581 = vmax.f32 %v555, %v568
  %v582 = vld [vmem:[%s2] sm:$0x1]
  %v584 = vlaneseq
  %v585 = vshrl.u32 %v584, 7
  %v586 = vsub.s32 0, %v585
  %v587 = vrot.slane %v582, %v586
  %v589 = vadd.f32 %v569, %v587
  %v590 = vadd.f32 %v570, %v587
  %v591 = vadd.f32 %v571, %v587
  %v592 = vadd.f32 %v572, %v587
  %v593 = vadd.f32 %v573, %v587
  %v594 = vadd.f32 %v574, %v587
  %v595 = vadd.f32 %v575, %v587
  %v596 = vadd.f32 %v576, %v587
  %v597 = vadd.f32 %v577, %v587
  %v598 = vadd.f32 %v578, %v587
  %v599 = vadd.f32 %v579, %v587
  %v600 = vadd.f32 %v580, %v587
  %v601 = vadd.f32 %v581, %v587
  %v602 = vmax.f32 %v589, 0.0
  %v603 = vmax.f32 %v590, 0.0
  %v604 = vmax.f32 %v591, 0.0
  %v605 = vmax.f32 %v592, 0.0
  %v606 = vmax.f32 %v593, 0.0
  %v607 = vmax.f32 %v594, 0.0
  %v608 = vmax.f32 %v595, 0.0
  %v609 = vmax.f32 %v596, 0.0
  %v610 = vmax.f32 %v597, 0.0
  %v611 = vmax.f32 %v598, 0.0
  %v612 = vmax.f32 %v599, 0.0
  %v613 = vmax.f32 %v600, 0.0
  %v614 = vmax.f32 %v601, 0.0
  %v615 = vld [vmem:[%s3] sm:$0x1]
  %v617 = vlaneseq
  %v618 = vshrl.u32 %v617, 7
  %v619 = vsub.s32 0, %v618
  %v620 = vrot.slane %v615, %v619
  %v622 = vmul.f32 %v602, %v620
  %v623 = vmul.f32 %v603, %v620
  %v624 = vmul.f32 %v604, %v620
  %v625 = vmul.f32 %v605, %v620
  %v626 = vmul.f32 %v606, %v620
  %v627 = vmul.f32 %v607, %v620
  %v628 = vmul.f32 %v608, %v620
  %v629 = vmul.f32 %v609, %v620
  %v630 = vmul.f32 %v610, %v620
  %v631 = vmul.f32 %v611, %v620
  %v632 = vmul.f32 %v612, %v620
  %v633 = vmul.f32 %v613, %v620
  %v634 = vmul.f32 %v614, %v620
  %v635 = vld [vmem:[%s4] sm:$0x1]
  %v637 = vlaneseq
  %v638 = vshrl.u32 %v637, 7
  %v639 = vsub.s32 0, %v638
  %v640 = vrot.slane %v635, %v639
  %v642 = vadd.f32 %v622, %v640
  %v643 = vadd.f32 %v623, %v640
  %v644 = vadd.f32 %v624, %v640
  %v645 = vadd.f32 %v625, %v640
  %v646 = vadd.f32 %v626, %v640
  %v647 = vadd.f32 %v627, %v640
  %v648 = vadd.f32 %v628, %v640
  %v649 = vadd.f32 %v629, %v640
  %v650 = vadd.f32 %v630, %v640
  %v651 = vadd.f32 %v631, %v640
  %v652 = vadd.f32 %v632, %v640
  %v653 = vadd.f32 %v633, %v640
  %v654 = vadd.f32 %v634, %v640
  %vm657 = vcmask 1040384
  %v658 = vrot.slane %v642, 7
  %v659 = vrot.slane %v643, 7
  %v660 = vsel %vm657, %v658, %v659
  %vm663 = vcmask 1041408
  %v664 = vrot.slane %v643, 6
  %v665 = vrot.slane %v644, 6
  %v666 = vsel %vm663, %v664, %v665
  %vm670 = vcmask 1046528
  %v671 = vrot.slane %v648, 1
  %v672 = vrot.slane %v649, 1
  %v673 = vsel %vm670, %v671, %v672
  %v676 = vrot.slane %v649, 7
  %v677 = vrot.slane %v650, 7
  %v678 = vsel %vm657, %v676, %v677
  %vm680 = vcmask 1043456
  %v681 = vrot.slane %v642, 4
  %v682 = vrot.slane %v643, 4
  %v683 = vsel %vm680, %v681, %v682
  %vm685 = vcmask 1044480
  %v686 = vrot.slane %v643, 3
  %v687 = vrot.slane %v644, 3
  %v688 = vsel %vm685, %v686, %v687
  %vm691 = vcmask 1045504
  %v692 = vrot.slane %v644, 2
  %v693 = vrot.slane %v645, 2
  %v694 = vsel %vm691, %v692, %v693
  %vm696 = vcmask 1042432
  %v697 = vrot.slane %v648, 5
  %v698 = vrot.slane %v649, 5
  %v699 = vsel %vm696, %v697, %v698
  %v701 = vrot.slane %v649, 4
  %v702 = vrot.slane %v650, 4
  %v703 = vsel %vm680, %v701, %v702
  %v706 = vrot.slane %v650, 3
  %v707 = vrot.slane %v651, 3
  %v708 = vsel %vm685, %v706, %v707
  %v711 = vrot.slane %v645, 4
  %v712 = vrot.slane %v646, 4
  %v713 = vsel %vm680, %v711, %v712
  %v716 = vrot.slane %v646, 3
  %v717 = vrot.slane %v647, 3
  %v718 = vsel %vm685, %v716, %v717
  %v720 = vrot.slane %v647, 2
  %v721 = vrot.slane %v648, 2
  %v722 = vsel %vm691, %v720, %v721
  %v725 = vrot.slane %v651, 5
  %v726 = vrot.slane %v652, 5
  %v727 = vsel %vm696, %v725, %v726
  %v730 = vrot.slane %v652, 4
  %v731 = vrot.slane %v653, 4
  %v732 = vsel %vm680, %v730, %v731
  %v735 = vrot.slane %v653, 3
  %v736 = vrot.slane %v654, 3
  %v737 = vsel %vm685, %v735, %v736
  %v739 = vrot.slane %v646, 7
  %v740 = vrot.slane %v647, 7
  %v741 = vsel %vm657, %v739, %v740
  %v743 = vrot.slane %v647, 6
  %v744 = vrot.slane %v648, 6
  %v745 = vsel %vm663, %v743, %v744
  %v747 = vrot.slane %v652, 1
  %v748 = vrot.slane %v653, 1
  %v749 = vsel %vm670, %v747, %v748
  %v751 = vrot.slane %v653, 7
  %v752 = vrot.slane %v654, 7
  %v753 = vsel %vm657, %v751, %v752
  %v755 = vpack.c.bf16 %v660, %v642
  %v756 = vpack.c.bf16 %v673, %v666
  %v757 = vpack.c.bf16 %v678, %v649
  %v758 = vpack.c.bf16 %v688, %v683
  %v759 = vpack.c.bf16 %v699, %v694
  %v760 = vpack.c.bf16 %v708, %v703
  %v761 = vpack.c.bf16 %v718, %v713
  %v762 = vpack.c.bf16 %v727, %v722
  %v763 = vpack.c.bf16 %v737, %v732
  %v764 = vpack.c.bf16 %v741, %v646
  %v765 = vpack.c.bf16 %v749, %v745
  %v766 = vpack.c.bf16 %v753, %v653
  %v767 = vld [vmem:[%s5] sm:$0xf]
  %v768 = vld [vmem:[%s5 + $0x4] sm:$0xf]
  %v769 = vld [vmem:[%s5 + $0x8] sm:$0xf]
  %v770 = vld [vmem:[%s5 + $0xc] sm:$0xf]
  %v771 = vrot.slane %v642, 1
  %v772 = vrot.slane %v643, 1
  %v773 = vsel %vm670, %v771, %v772
  %v775 = vrot.slane %v644, 7
  %v776 = vsel %vm657, %v659, %v775
  %v778 = vrot.slane %v649, 2
  %v779 = vsel %vm691, %v721, %v778
  %v781 = vrot.slane %v650, 1
  %v782 = vsel %vm670, %v672, %v781
  %v784 = vrot.slane %v645, 5
  %v785 = vrot.slane %v646, 5
  %v786 = vsel %vm696, %v784, %v785
  %v788 = vrot.slane %v647, 4
  %v789 = vsel %vm680, %v712, %v788
  %v791 = vrot.slane %v648, 3
  %v792 = vsel %vm685, %v717, %v791
  %v794 = vrot.slane %v651, 6
  %v795 = vrot.slane %v652, 6
  %v796 = vsel %vm663, %v794, %v795
  %v798 = vrot.slane %v653, 5
  %v799 = vsel %vm696, %v726, %v798
  %v801 = vrot.slane %v654, 4
  %v802 = vsel %vm680, %v731, %v801
  %v804 = vpack.c.bf16 %v643, %v773
  %v805 = vpack.c.bf16 %v779, %v776
  %v806 = vpack.c.bf16 %v650, %v782
  %v807 = vpack.c.bf16 %v789, %v786
  %v808 = vpack.c.bf16 %v796, %v792
  %v809 = vpack.c.bf16 %v802, %v799
  %v810 = vld [vmem:[%s5 + $0x10] sm:$0xf]
  %v811 = vld [vmem:[%s5 + $0x14] sm:$0xf]
  %v812 = vld [vmem:[%s5 + $0x18] sm:$0xf]
  %v813 = vld [vmem:[%s5 + $0x1c] sm:$0xf]
  %v818 = vunpack.c.l.b16 %v810
  %v819 = vunpack.c.l.b16 %v811
  %v820 = vunpack.c.l.b16 %v812
  %v821 = vunpack.c.l.b16 %v813
  %v822 = vpack.c.b16 %v819, %v818
  %v823 = vpack.c.b16 %v821, %v820
  %vm826 = vcmask 261120
  %v828 = vsel %vm826, %v758, 0
  %v831 = vsel %vm826, %v759, 0
  %v834 = vsel %vm826, %v760, 0
  %v837 = vsel %vm826, %v804, 0
  %v840 = vsel %vm826, %v805, 0
  %v843 = vsel %vm826, %v806, 0
  %v846 = vsel %vm826, %v764, 0
  %v849 = vsel %vm826, %v765, 0
  %v852 = vsel %vm826, %v766, 0
  %v855 = vsel %vm826, %v807, 0
  %v858 = vsel %vm826, %v808, 0
  %v861 = vsel %vm826, %v809, 0
  %863 = vmatprep.subr.bf16.mxu0 0
  %864 = vmatpush1.bf16.msra.mxu0 0
  %865 = vmatprep.subr.bf16.mxu0 0
  %866 = vmatpush1.bf16.msra.mxu0 0
  %867 = vmatprep.subr.bf16.mxu0 0
  %868 = vmatpush1.bf16.msra.mxu0 0
  %869 = vmatprep.subr.bf16.mxu0 0
  %870 = vmatpush1.bf16.msra.mxu0 0
  %871 = vmatprep.subr.bf16.mxu0 0
  %872 = vmatpush1.bf16.msra.mxu0 0
  %873 = vmatprep.subr.bf16.mxu0 0
  %874 = vmatpush1.bf16.msra.mxu0 0
  %875 = vmatprep.subr.bf16.mxu0 0
  %876 = vmatpush1.bf16.msra.mxu0 %v823
  %877 = vmatprep.subr.bf16.mxu0 0
  %878 = vmatpush1.bf16.msra.mxu0 %v822
  %879 = vmatprep.subr.bf16.mxu0 0
  %880 = vmatpush2.bf16.msra.mxu0 0
  %881 = vmatprep.subr.bf16.mxu0 0
  %882 = vmatpush2.bf16.msra.mxu0 0
  %883 = vmatprep.subr.bf16.mxu0 0
  %884 = vmatpush2.bf16.msra.mxu0 0
  %885 = vmatprep.subr.bf16.mxu0 0
  %886 = vmatpush2.bf16.msra.mxu0 0
  %887 = vmatprep.subr.bf16.mxu0 0
  %888 = vmatpush2.bf16.msra.mxu0 0
  %889 = vmatprep.subr.bf16.mxu0 0
  %890 = vmatpush2.bf16.msra.mxu0 0
  %891 = vmatprep.subr.bf16.mxu0 0
  %892 = vmatpush2.bf16.msra.mxu0 0
  %893 = vmatprep.subr.bf16.mxu0 0
  %894 = vmatpush2.bf16.msra.mxu0 0
  %895 = vmatprep.mubr.bf16.mxu0 0
  %896 = vmatmul.mubr.bf16.gmra.mxu0 %v828
  %v897 = vpop.f32.mrf.mxu0
  %v898 = vadd.f32 0.0, %v897
  %v899 = vpop.f32.mrf.mxu0
  %v900 = vpop.f32.mrf.mxu0
  %v901 = vadd.f32 0.0, %v900
  %v902 = vpop.f32.mrf.mxu0
  %903 = vmatprep.mubr.bf16.mxu0 0
  %904 = vmatmul.mubr.bf16.gmra.mxu0 %v831
  %v905 = vpop.f32.mrf.mxu0
  %v906 = vadd.f32 0.0, %v905
  %v907 = vpop.f32.mrf.mxu0
  %v908 = vpop.f32.mrf.mxu0
  %v909 = vadd.f32 0.0, %v908
  %v910 = vpop.f32.mrf.mxu0
  %911 = vmatprep.mubr.bf16.mxu0 0
  %912 = vmatmul.mubr.bf16.gmra.mxu0 %v834
  %v913 = vpop.f32.mrf.mxu0
  %v914 = vadd.f32 0.0, %v913
  %v915 = vpop.f32.mrf.mxu0
  %v916 = vpop.f32.mrf.mxu0
  %v917 = vadd.f32 0.0, %v916
  %v918 = vpop.f32.mrf.mxu0
  %919 = vmatprep.mubr.bf16.mxu0 0
  %920 = vmatmul.mubr.bf16.gmra.mxu0 %v837
  %v921 = vpop.f32.mrf.mxu0
  %v922 = vadd.f32 0.0, %v921
  %v923 = vpop.f32.mrf.mxu0
  %v924 = vpop.f32.mrf.mxu0
  %v925 = vadd.f32 0.0, %v924
  %v926 = vpop.f32.mrf.mxu0
  %927 = vmatprep.mubr.bf16.mxu0 0
  %928 = vmatmul.mubr.bf16.gmra.mxu0 %v840
  %v929 = vpop.f32.mrf.mxu0
  %v930 = vadd.f32 0.0, %v929
  %v931 = vpop.f32.mrf.mxu0
  %v932 = vpop.f32.mrf.mxu0
  %v933 = vadd.f32 0.0, %v932
  %v934 = vpop.f32.mrf.mxu0
  %935 = vmatprep.mubr.bf16.mxu0 0
  %936 = vmatmul.mubr.bf16.gmra.mxu0 %v843
  %v937 = vpop.f32.mrf.mxu0
  %v938 = vadd.f32 0.0, %v937
  %v939 = vpop.f32.mrf.mxu0
  %v940 = vpop.f32.mrf.mxu0
  %v941 = vadd.f32 0.0, %v940
  %v942 = vpop.f32.mrf.mxu0
  %943 = vmatprep.mubr.bf16.mxu0 0
  %944 = vmatmul.mubr.bf16.gmra.mxu0 %v846
  %v945 = vpop.f32.mrf.mxu0
  %v946 = vadd.f32 0.0, %v945
  %v947 = vpop.f32.mrf.mxu0
  %v948 = vpop.f32.mrf.mxu0
  %v949 = vadd.f32 0.0, %v948
  %v950 = vpop.f32.mrf.mxu0
  %951 = vmatprep.mubr.bf16.mxu0 0
  %952 = vmatmul.mubr.bf16.gmra.mxu0 %v849
  %v953 = vpop.f32.mrf.mxu0
  %v954 = vadd.f32 0.0, %v953
  %v955 = vpop.f32.mrf.mxu0
  %v956 = vpop.f32.mrf.mxu0
  %v957 = vadd.f32 0.0, %v956
  %v958 = vpop.f32.mrf.mxu0
  %959 = vmatprep.mubr.bf16.mxu0 0
  %960 = vmatmul.mubr.bf16.gmra.mxu0 %v852
  %v961 = vpop.f32.mrf.mxu0
  %v962 = vadd.f32 0.0, %v961
  %v963 = vpop.f32.mrf.mxu0
  %v964 = vpop.f32.mrf.mxu0
  %v965 = vadd.f32 0.0, %v964
  %v966 = vpop.f32.mrf.mxu0
  %967 = vmatprep.mubr.bf16.mxu0 0
  %968 = vmatmul.mubr.bf16.gmra.mxu0 %v855
  %v969 = vpop.f32.mrf.mxu0
  %v970 = vadd.f32 0.0, %v969
  %v971 = vpop.f32.mrf.mxu0
  %v972 = vpop.f32.mrf.mxu0
  %v973 = vadd.f32 0.0, %v972
  %v974 = vpop.f32.mrf.mxu0
  %975 = vmatprep.mubr.bf16.mxu0 0
  %976 = vmatmul.mubr.bf16.gmra.mxu0 %v858
  %v977 = vpop.f32.mrf.mxu0
  %v978 = vadd.f32 0.0, %v977
  %v979 = vpop.f32.mrf.mxu0
  %v980 = vpop.f32.mrf.mxu0
  %v981 = vadd.f32 0.0, %v980
  %v982 = vpop.f32.mrf.mxu0
  %983 = vmatprep.mubr.bf16.mxu0 0
  %984 = vmatmul.mubr.bf16.gmra.mxu0 %v861
  %v985 = vpop.f32.mrf.mxu0
  %v986 = vadd.f32 0.0, %v985
  %v987 = vpop.f32.mrf.mxu0
  %v988 = vpop.f32.mrf.mxu0
  %v989 = vadd.f32 0.0, %v988
  %v990 = vpop.f32.mrf.mxu0
  %991 = vdwg.mxu0
  %v996 = vunpack.c.l.b16 %v767
  %v997 = vunpack.c.l.b16 %v768
  %v998 = vunpack.c.l.b16 %v769
  %v999 = vunpack.c.l.b16 %v770
  %v1000 = vpack.c.b16 %v997, %v996
  %v1001 = vpack.c.b16 %v999, %v998
  %v1005 = vsel %vm826, %v755, 0
  %v1008 = vsel %vm826, %v756, 0
  %v1011 = vsel %vm826, %v757, 0
  %v1014 = vsel %vm826, %v761, 0
  %v1017 = vsel %vm826, %v762, 0
  %v1020 = vsel %vm826, %v763, 0
  %1022 = vmatprep.subr.bf16.mxu0 0
  %1023 = vmatpush1.bf16.msra.mxu0 0
  %1024 = vmatprep.subr.bf16.mxu0 0
  %1025 = vmatpush1.bf16.msra.mxu0 0
  %1026 = vmatprep.subr.bf16.mxu0 0
  %1027 = vmatpush1.bf16.msra.mxu0 0
  %1028 = vmatprep.subr.bf16.mxu0 0
  %1029 = vmatpush1.bf16.msra.mxu0 0
  %1030 = vmatprep.subr.bf16.mxu0 0
  %1031 = vmatpush1.bf16.msra.mxu0 0
  %1032 = vmatprep.subr.bf16.mxu0 0
  %1033 = vmatpush1.bf16.msra.mxu0 0
  %1034 = vmatprep.subr.bf16.mxu0 0
  %1035 = vmatpush1.bf16.msra.mxu0 %v1001
  %1036 = vmatprep.subr.bf16.mxu0 0
  %1037 = vmatpush1.bf16.msra.mxu0 %v1000
  %1038 = vmatprep.subr.bf16.mxu0 0
  %1039 = vmatpush2.bf16.msra.mxu0 0
  %1040 = vmatprep.subr.bf16.mxu0 0
  %1041 = vmatpush2.bf16.msra.mxu0 0
  %1042 = vmatprep.subr.bf16.mxu0 0
  %1043 = vmatpush2.bf16.msra.mxu0 0
  %1044 = vmatprep.subr.bf16.mxu0 0
  %1045 = vmatpush2.bf16.msra.mxu0 0
  %1046 = vmatprep.subr.bf16.mxu0 0
  %1047 = vmatpush2.bf16.msra.mxu0 0
  %1048 = vmatprep.subr.bf16.mxu0 0
  %1049 = vmatpush2.bf16.msra.mxu0 0
  %1050 = vmatprep.subr.bf16.mxu0 0
  %1051 = vmatpush2.bf16.msra.mxu0 0
  %1052 = vmatprep.subr.bf16.mxu0 0
  %1053 = vmatpush2.bf16.msra.mxu0 0
  %1054 = vmatprep.mubr.bf16.mxu0 0
  %1055 = vmatmul.mubr.bf16.gmra.mxu0 %v1005
  %v1056 = vpop.f32.mrf.mxu0
  %v1057 = vadd.f32 %v898, %v1056
  %v1058 = vpop.f32.mrf.mxu0
  %v1059 = vpop.f32.mrf.mxu0
  %v1060 = vadd.f32 %v901, %v1059
  %v1061 = vpop.f32.mrf.mxu0
  %1062 = vmatprep.mubr.bf16.mxu0 0
  %1063 = vmatmul.mubr.bf16.gmra.mxu0 %v1008
  %v1064 = vpop.f32.mrf.mxu0
  %v1065 = vadd.f32 %v906, %v1064
  %v1066 = vpop.f32.mrf.mxu0
  %v1067 = vpop.f32.mrf.mxu0
  %v1068 = vadd.f32 %v909, %v1067
  %v1069 = vpop.f32.mrf.mxu0
  %1070 = vmatprep.mubr.bf16.mxu0 0
  %1071 = vmatmul.mubr.bf16.gmra.mxu0 %v1011
  %v1072 = vpop.f32.mrf.mxu0
  %v1073 = vadd.f32 %v914, %v1072
  %v1074 = vpop.f32.mrf.mxu0
  %v1075 = vpop.f32.mrf.mxu0
  %v1076 = vadd.f32 %v917, %v1075
  %v1077 = vpop.f32.mrf.mxu0
  %1078 = vmatprep.mubr.bf16.mxu0 0
  %1079 = vmatmul.mubr.bf16.gmra.mxu0 %v828
  %v1080 = vpop.f32.mrf.mxu0
  %v1081 = vadd.f32 %v922, %v1080
  %v1082 = vpop.f32.mrf.mxu0
  %v1083 = vpop.f32.mrf.mxu0
  %v1084 = vadd.f32 %v925, %v1083
  %v1085 = vpop.f32.mrf.mxu0
  %1086 = vmatprep.mubr.bf16.mxu0 0
  %1087 = vmatmul.mubr.bf16.gmra.mxu0 %v831
  %v1088 = vpop.f32.mrf.mxu0
  %v1089 = vadd.f32 %v930, %v1088
  %v1090 = vpop.f32.mrf.mxu0
  %v1091 = vpop.f32.mrf.mxu0
  %v1092 = vadd.f32 %v933, %v1091
  %v1093 = vpop.f32.mrf.mxu0
  %1094 = vmatprep.mubr.bf16.mxu0 0
  %1095 = vmatmul.mubr.bf16.gmra.mxu0 %v834
  %v1096 = vpop.f32.mrf.mxu0
  %v1097 = vadd.f32 %v938, %v1096
  %v1098 = vpop.f32.mrf.mxu0
  %v1099 = vpop.f32.mrf.mxu0
  %v1100 = vadd.f32 %v941, %v1099
  %v1101 = vpop.f32.mrf.mxu0
  %1102 = vmatprep.mubr.bf16.mxu0 0
  %1103 = vmatmul.mubr.bf16.gmra.mxu0 %v1014
  %v1104 = vpop.f32.mrf.mxu0
  %v1105 = vadd.f32 %v946, %v1104
  %v1106 = vpop.f32.mrf.mxu0
  %v1107 = vpop.f32.mrf.mxu0
  %v1108 = vadd.f32 %v949, %v1107
  %v1109 = vpop.f32.mrf.mxu0
  %1110 = vmatprep.mubr.bf16.mxu0 0
  %1111 = vmatmul.mubr.bf16.gmra.mxu0 %v1017
  %v1112 = vpop.f32.mrf.mxu0
  %v1113 = vadd.f32 %v954, %v1112
  %v1114 = vpop.f32.mrf.mxu0
  %v1115 = vpop.f32.mrf.mxu0
  %v1116 = vadd.f32 %v957, %v1115
  %v1117 = vpop.f32.mrf.mxu0
  %1118 = vmatprep.mubr.bf16.mxu0 0
  %1119 = vmatmul.mubr.bf16.gmra.mxu0 %v1020
  %v1120 = vpop.f32.mrf.mxu0
  %v1121 = vadd.f32 %v962, %v1120
  %v1122 = vpop.f32.mrf.mxu0
  %v1123 = vpop.f32.mrf.mxu0
  %v1124 = vadd.f32 %v965, %v1123
  %v1125 = vpop.f32.mrf.mxu0
  %1126 = vmatprep.mubr.bf16.mxu0 0
  %1127 = vmatmul.mubr.bf16.gmra.mxu0 %v846
  %v1128 = vpop.f32.mrf.mxu0
  %v1129 = vadd.f32 %v970, %v1128
  %v1130 = vpop.f32.mrf.mxu0
  %v1131 = vpop.f32.mrf.mxu0
  %v1132 = vadd.f32 %v973, %v1131
  %v1133 = vpop.f32.mrf.mxu0
  %1134 = vmatprep.mubr.bf16.mxu0 0
  %1135 = vmatmul.mubr.bf16.gmra.mxu0 %v849
  %v1136 = vpop.f32.mrf.mxu0
  %v1137 = vadd.f32 %v978, %v1136
  %v1138 = vpop.f32.mrf.mxu0
  %v1139 = vpop.f32.mrf.mxu0
  %v1140 = vadd.f32 %v981, %v1139
  %v1141 = vpop.f32.mrf.mxu0
  %1142 = vmatprep.mubr.bf16.mxu0 0
  %1143 = vmatmul.mubr.bf16.gmra.mxu0 %v852
  %v1144 = vpop.f32.mrf.mxu0
  %v1145 = vadd.f32 %v986, %v1144
  %v1146 = vpop.f32.mrf.mxu0
  %v1147 = vpop.f32.mrf.mxu0
  %v1148 = vadd.f32 %v989, %v1147
  %v1149 = vpop.f32.mrf.mxu0
  %1150 = vdwg.mxu0
  %v1151 = vrot.slane %v644, 5
  %v1152 = vsel %vm696, %v1151, %v784
  %v1154 = vrot.slane %v650, 6
  %v1155 = vsel %vm663, %v1154, %v794
  %v1157 = vrot.slane %v645, 1
  %v1158 = vrot.slane %v646, 1
  %v1159 = vsel %vm670, %v1157, %v1158
  %v1161 = vrot.slane %v651, 2
  %v1162 = vrot.slane %v652, 2
  %v1163 = vsel %vm691, %v1161, %v1162
  %v1165 = vpack.c.bf16 %v666, %v660
  %v1166 = vpack.c.bf16 %v649, %v1152
  %v1167 = vpack.c.bf16 %v1155, %v678
  %v1168 = vpack.c.bf16 %v694, %v688
  %v1169 = vpack.c.bf16 %v703, %v1159
  %v1170 = vpack.c.bf16 %v1163, %v708
  %v1171 = vld [vmem:[%s5 + $0x20] sm:$0xf]
  %v1172 = vld [vmem:[%s5 + $0x24] sm:$0xf]
  %v1173 = vld [vmem:[%s5 + $0x28] sm:$0xf]
  %v1174 = vld [vmem:[%s5 + $0x2c] sm:$0xf]
  %v1179 = vunpack.c.l.b16 %v1171
  %v1180 = vunpack.c.l.b16 %v1172
  %v1181 = vunpack.c.l.b16 %v1173
  %v1182 = vunpack.c.l.b16 %v1174
  %v1183 = vpack.c.b16 %v1180, %v1179
  %v1184 = vpack.c.b16 %v1182, %v1181
  %v1188 = vsel %vm826, %v1165, 0
  %v1191 = vsel %vm826, %v1166, 0
  %v1194 = vsel %vm826, %v1167, 0
  %v1197 = vsel %vm826, %v1168, 0
  %v1200 = vsel %vm826, %v1169, 0
  %v1203 = vsel %vm826, %v1170, 0
  %1205 = vmatprep.subr.bf16.mxu0 0
  %1206 = vmatpush1.bf16.msra.mxu0 0
  %1207 = vmatprep.subr.bf16.mxu0 0
  %1208 = vmatpush1.bf16.msra.mxu0 0
  %1209 = vmatprep.subr.bf16.mxu0 0
  %1210 = vmatpush1.bf16.msra.mxu0 0
  %1211 = vmatprep.subr.bf16.mxu0 0
  %1212 = vmatpush1.bf16.msra.mxu0 0
  %1213 = vmatprep.subr.bf16.mxu0 0
  %1214 = vmatpush1.bf16.msra.mxu0 0
  %1215 = vmatprep.subr.bf16.mxu0 0
  %1216 = vmatpush1.bf16.msra.mxu0 0
  %1217 = vmatprep.subr.bf16.mxu0 0
  %1218 = vmatpush1.bf16.msra.mxu0 %v1184
  %1219 = vmatprep.subr.bf16.mxu0 0
  %1220 = vmatpush1.bf16.msra.mxu0 %v1183
  %1221 = vmatprep.subr.bf16.mxu0 0
  %1222 = vmatpush2.bf16.msra.mxu0 0
  %1223 = vmatprep.subr.bf16.mxu0 0
  %1224 = vmatpush2.bf16.msra.mxu0 0
  %1225 = vmatprep.subr.bf16.mxu0 0
  %1226 = vmatpush2.bf16.msra.mxu0 0
  %1227 = vmatprep.subr.bf16.mxu0 0
  %1228 = vmatpush2.bf16.msra.mxu0 0
  %1229 = vmatprep.subr.bf16.mxu0 0
  %1230 = vmatpush2.bf16.msra.mxu0 0
  %1231 = vmatprep.subr.bf16.mxu0 0
  %1232 = vmatpush2.bf16.msra.mxu0 0
  %1233 = vmatprep.subr.bf16.mxu0 0
  %1234 = vmatpush2.bf16.msra.mxu0 0
  %1235 = vmatprep.subr.bf16.mxu0 0
  %1236 = vmatpush2.bf16.msra.mxu0 0
  %1237 = vmatprep.mubr.bf16.mxu0 0
  %1238 = vmatmul.mubr.bf16.gmra.mxu0 %v1014
  %v1239 = vpop.f32.mrf.mxu0
  %v1240 = vadd.f32 0.0, %v1239
  %v1241 = vpop.f32.mrf.mxu0
  %v1242 = vpop.f32.mrf.mxu0
  %v1243 = vadd.f32 0.0, %v1242
  %v1244 = vpop.f32.mrf.mxu0
  %1245 = vmatprep.mubr.bf16.mxu0 0
  %1246 = vmatmul.mubr.bf16.gmra.mxu0 %v1017
  %v1247 = vpop.f32.mrf.mxu0
  %v1248 = vadd.f32 0.0, %v1247
  %v1249 = vpop.f32.mrf.mxu0
  %v1250 = vpop.f32.mrf.mxu0
  %v1251 = vadd.f32 0.0, %v1250
  %v1252 = vpop.f32.mrf.mxu0
  %1253 = vmatprep.mubr.bf16.mxu0 0
  %1254 = vmatmul.mubr.bf16.gmra.mxu0 %v1020
  %v1255 = vpop.f32.mrf.mxu0
  %v1256 = vadd.f32 0.0, %v1255
  %v1257 = vpop.f32.mrf.mxu0
  %v1258 = vpop.f32.mrf.mxu0
  %v1259 = vadd.f32 0.0, %v1258
  %v1260 = vpop.f32.mrf.mxu0
  %1261 = vmatprep.mubr.bf16.mxu0 0
  %1262 = vmatmul.mubr.bf16.gmra.mxu0 %v846
  %v1263 = vpop.f32.mrf.mxu0
  %v1264 = vadd.f32 0.0, %v1263
  %v1265 = vpop.f32.mrf.mxu0
  %v1266 = vpop.f32.mrf.mxu0
  %v1267 = vadd.f32 0.0, %v1266
  %v1268 = vpop.f32.mrf.mxu0
  %1269 = vmatprep.mubr.bf16.mxu0 0
  %1270 = vmatmul.mubr.bf16.gmra.mxu0 %v849
  %v1271 = vpop.f32.mrf.mxu0
  %v1272 = vadd.f32 0.0, %v1271
  %v1273 = vpop.f32.mrf.mxu0
  %v1274 = vpop.f32.mrf.mxu0
  %v1275 = vadd.f32 0.0, %v1274
  %v1276 = vpop.f32.mrf.mxu0
  %1277 = vmatprep.mubr.bf16.mxu0 0
  %1278 = vmatmul.mubr.bf16.gmra.mxu0 %v852
  %v1279 = vpop.f32.mrf.mxu0
  %v1280 = vadd.f32 0.0, %v1279
  %v1281 = vpop.f32.mrf.mxu0
  %v1282 = vpop.f32.mrf.mxu0
  %v1283 = vadd.f32 0.0, %v1282
  %v1284 = vpop.f32.mrf.mxu0
  %1285 = vmatprep.mubr.bf16.mxu0 0
  %1286 = vmatmul.mubr.bf16.gmra.mxu0 %v1188
  %v1287 = vpop.f32.mrf.mxu0
  %v1288 = vadd.f32 0.0, %v1287
  %v1289 = vpop.f32.mrf.mxu0
  %v1290 = vpop.f32.mrf.mxu0
  %v1291 = vadd.f32 0.0, %v1290
  %v1292 = vpop.f32.mrf.mxu0
  %1293 = vmatprep.mubr.bf16.mxu0 0
  %1294 = vmatmul.mubr.bf16.gmra.mxu0 %v1191
  %v1295 = vpop.f32.mrf.mxu0
  %v1296 = vadd.f32 0.0, %v1295
  %v1297 = vpop.f32.mrf.mxu0
  %v1298 = vpop.f32.mrf.mxu0
  %v1299 = vadd.f32 0.0, %v1298
  %v1300 = vpop.f32.mrf.mxu0
  %1301 = vmatprep.mubr.bf16.mxu0 0
  %1302 = vmatmul.mubr.bf16.gmra.mxu0 %v1194
  %v1303 = vpop.f32.mrf.mxu0
  %v1304 = vadd.f32 0.0, %v1303
  %v1305 = vpop.f32.mrf.mxu0
  %v1306 = vpop.f32.mrf.mxu0
  %v1307 = vadd.f32 0.0, %v1306
  %v1308 = vpop.f32.mrf.mxu0
  %1309 = vmatprep.mubr.bf16.mxu0 0
  %1310 = vmatmul.mubr.bf16.gmra.mxu0 %v1197
  %v1311 = vpop.f32.mrf.mxu0
  %v1312 = vadd.f32 0.0, %v1311
  %v1313 = vpop.f32.mrf.mxu0
  %v1314 = vpop.f32.mrf.mxu0
  %v1315 = vadd.f32 0.0, %v1314
  %v1316 = vpop.f32.mrf.mxu0
  %1317 = vmatprep.mubr.bf16.mxu0 0
  %1318 = vmatmul.mubr.bf16.gmra.mxu0 %v1200
  %v1319 = vpop.f32.mrf.mxu0
  %v1320 = vadd.f32 0.0, %v1319
  %v1321 = vpop.f32.mrf.mxu0
  %v1322 = vpop.f32.mrf.mxu0
  %v1323 = vadd.f32 0.0, %v1322
  %v1324 = vpop.f32.mrf.mxu0
  %1325 = vmatprep.mubr.bf16.mxu0 0
  %1326 = vmatmul.mubr.bf16.gmra.mxu0 %v1203
  %v1327 = vpop.f32.mrf.mxu0
  %v1328 = vadd.f32 0.0, %v1327
  %v1329 = vpop.f32.mrf.mxu0
  %v1330 = vpop.f32.mrf.mxu0
  %v1331 = vadd.f32 0.0, %v1330
  %v1332 = vpop.f32.mrf.mxu0
  %1333 = vdwg.mxu0
  %v1334 = vadd.f32 %v1057, %v1240
  %v1335 = vadd.f32 %v1060, %v1243
  %v1336 = vadd.f32 %v1065, %v1248
  %v1337 = vadd.f32 %v1068, %v1251
  %v1338 = vadd.f32 %v1073, %v1256
  %v1339 = vadd.f32 %v1076, %v1259
  %v1340 = vadd.f32 %v1081, %v1264
  %v1341 = vadd.f32 %v1084, %v1267
  %v1342 = vadd.f32 %v1089, %v1272
  %v1343 = vadd.f32 %v1092, %v1275
  %v1344 = vadd.f32 %v1097, %v1280
  %v1345 = vadd.f32 %v1100, %v1283
  %v1346 = vadd.f32 %v1105, %v1288
  %v1347 = vadd.f32 %v1108, %v1291
  %v1348 = vadd.f32 %v1113, %v1296
  %v1349 = vadd.f32 %v1116, %v1299
  %v1350 = vadd.f32 %v1121, %v1304
  %v1351 = vadd.f32 %v1124, %v1307
  %v1352 = vadd.f32 %v1129, %v1312
  %v1353 = vadd.f32 %v1132, %v1315
  %v1354 = vadd.f32 %v1137, %v1320
  %v1355 = vadd.f32 %v1140, %v1323
  %v1356 = vadd.f32 %v1145, %v1328
  %v1357 = vadd.f32 %v1148, %v1331
  %v1358 = vrot.slane %v645, 6
  %v1359 = vsel %vm663, %v665, %v1358
  %v1361 = vrot.slane %v651, 7
  %v1362 = vsel %vm657, %v677, %v1361
  %v1364 = vpack.c.bf16 %v776, %v643
  %v1365 = vpack.c.bf16 %v782, %v1359
  %v1366 = vpack.c.bf16 %v1362, %v650
  %v1367 = vld [vmem:[%s5 + $0x30] sm:$0xf]
  %v1368 = vld [vmem:[%s5 + $0x34] sm:$0xf]
  %v1369 = vld [vmem:[%s5 + $0x38] sm:$0xf]
  %v1370 = vld [vmem:[%s5 + $0x3c] sm:$0xf]
  %v1375 = vunpack.c.l.b16 %v1367
  %v1376 = vunpack.c.l.b16 %v1368
  %v1377 = vunpack.c.l.b16 %v1369
  %v1378 = vunpack.c.l.b16 %v1370
  %v1379 = vpack.c.b16 %v1376, %v1375
  %v1380 = vpack.c.b16 %v1378, %v1377
  %v1384 = vsel %vm826, %v1364, 0
  %v1387 = vsel %vm826, %v1365, 0
  %v1390 = vsel %vm826, %v1366, 0
  %1392 = vmatprep.subr.bf16.mxu0 0
  %1393 = vmatpush1.bf16.msra.mxu0 0
  %1394 = vmatprep.subr.bf16.mxu0 0
  %1395 = vmatpush1.bf16.msra.mxu0 0
  %1396 = vmatprep.subr.bf16.mxu0 0
  %1397 = vmatpush1.bf16.msra.mxu0 0
  %1398 = vmatprep.subr.bf16.mxu0 0
  %1399 = vmatpush1.bf16.msra.mxu0 0
  %1400 = vmatprep.subr.bf16.mxu0 0
  %1401 = vmatpush1.bf16.msra.mxu0 0
  %1402 = vmatprep.subr.bf16.mxu0 0
  %1403 = vmatpush1.bf16.msra.mxu0 0
  %1404 = vmatprep.subr.bf16.mxu0 0
  %1405 = vmatpush1.bf16.msra.mxu0 %v1380
  %1406 = vmatprep.subr.bf16.mxu0 0
  %1407 = vmatpush1.bf16.msra.mxu0 %v1379
  %1408 = vmatprep.subr.bf16.mxu0 0
  %1409 = vmatpush2.bf16.msra.mxu0 0
  %1410 = vmatprep.subr.bf16.mxu0 0
  %1411 = vmatpush2.bf16.msra.mxu0 0
  %1412 = vmatprep.subr.bf16.mxu0 0
  %1413 = vmatpush2.bf16.msra.mxu0 0
  %1414 = vmatprep.subr.bf16.mxu0 0
  %1415 = vmatpush2.bf16.msra.mxu0 0
  %1416 = vmatprep.subr.bf16.mxu0 0
  %1417 = vmatpush2.bf16.msra.mxu0 0
  %1418 = vmatprep.subr.bf16.mxu0 0
  %1419 = vmatpush2.bf16.msra.mxu0 0
  %1420 = vmatprep.subr.bf16.mxu0 0
  %1421 = vmatpush2.bf16.msra.mxu0 0
  %1422 = vmatprep.subr.bf16.mxu0 0
  %1423 = vmatpush2.bf16.msra.mxu0 0
  %1424 = vmatprep.mubr.bf16.mxu0 0
  %1425 = vmatmul.mubr.bf16.gmra.mxu0 %v846
  %v1426 = vpop.f32.mrf.mxu0
  %v1427 = vadd.f32 0.0, %v1426
  %v1428 = vpop.f32.mrf.mxu0
  %v1429 = vpop.f32.mrf.mxu0
  %v1430 = vadd.f32 0.0, %v1429
  %v1431 = vpop.f32.mrf.mxu0
  %1432 = vmatprep.mubr.bf16.mxu0 0
  %1433 = vmatmul.mubr.bf16.gmra.mxu0 %v849
  %v1434 = vpop.f32.mrf.mxu0
  %v1435 = vadd.f32 0.0, %v1434
  %v1436 = vpop.f32.mrf.mxu0
  %v1437 = vpop.f32.mrf.mxu0
  %v1438 = vadd.f32 0.0, %v1437
  %v1439 = vpop.f32.mrf.mxu0
  %1440 = vmatprep.mubr.bf16.mxu0 0
  %1441 = vmatmul.mubr.bf16.gmra.mxu0 %v852
  %v1442 = vpop.f32.mrf.mxu0
  %v1443 = vadd.f32 0.0, %v1442
  %v1444 = vpop.f32.mrf.mxu0
  %v1445 = vpop.f32.mrf.mxu0
  %v1446 = vadd.f32 0.0, %v1445
  %v1447 = vpop.f32.mrf.mxu0
  %1448 = vmatprep.mubr.bf16.mxu0 0
  %1449 = vmatmul.mubr.bf16.gmra.mxu0 %v855
  %v1450 = vpop.f32.mrf.mxu0
  %v1451 = vadd.f32 0.0, %v1450
  %v1452 = vpop.f32.mrf.mxu0
  %v1453 = vpop.f32.mrf.mxu0
  %v1454 = vadd.f32 0.0, %v1453
  %v1455 = vpop.f32.mrf.mxu0
  %1456 = vmatprep.mubr.bf16.mxu0 0
  %1457 = vmatmul.mubr.bf16.gmra.mxu0 %v858
  %v1458 = vpop.f32.mrf.mxu0
  %v1459 = vadd.f32 0.0, %v1458
  %v1460 = vpop.f32.mrf.mxu0
  %v1461 = vpop.f32.mrf.mxu0
  %v1462 = vadd.f32 0.0, %v1461
  %v1463 = vpop.f32.mrf.mxu0
  %1464 = vmatprep.mubr.bf16.mxu0 0
  %1465 = vmatmul.mubr.bf16.gmra.mxu0 %v861
  %v1466 = vpop.f32.mrf.mxu0
  %v1467 = vadd.f32 0.0, %v1466
  %v1468 = vpop.f32.mrf.mxu0
  %v1469 = vpop.f32.mrf.mxu0
  %v1470 = vadd.f32 0.0, %v1469
  %v1471 = vpop.f32.mrf.mxu0
  %1472 = vmatprep.mubr.bf16.mxu0 0
  %1473 = vmatmul.mubr.bf16.gmra.mxu0 %v1197
  %v1474 = vpop.f32.mrf.mxu0
  %v1475 = vadd.f32 0.0, %v1474
  %v1476 = vpop.f32.mrf.mxu0
  %v1477 = vpop.f32.mrf.mxu0
  %v1478 = vadd.f32 0.0, %v1477
  %v1479 = vpop.f32.mrf.mxu0
  %1480 = vmatprep.mubr.bf16.mxu0 0
  %1481 = vmatmul.mubr.bf16.gmra.mxu0 %v1200
  %v1482 = vpop.f32.mrf.mxu0
  %v1483 = vadd.f32 0.0, %v1482
  %v1484 = vpop.f32.mrf.mxu0
  %v1485 = vpop.f32.mrf.mxu0
  %v1486 = vadd.f32 0.0, %v1485
  %v1487 = vpop.f32.mrf.mxu0
  %1488 = vmatprep.mubr.bf16.mxu0 0
  %1489 = vmatmul.mubr.bf16.gmra.mxu0 %v1203
  %v1490 = vpop.f32.mrf.mxu0
  %v1491 = vadd.f32 0.0, %v1490
  %v1492 = vpop.f32.mrf.mxu0
  %v1493 = vpop.f32.mrf.mxu0
  %v1494 = vadd.f32 0.0, %v1493
  %v1495 = vpop.f32.mrf.mxu0
  %1496 = vmatprep.mubr.bf16.mxu0 0
  %1497 = vmatmul.mubr.bf16.gmra.mxu0 %v1384
  %v1498 = vpop.f32.mrf.mxu0
  %v1499 = vadd.f32 0.0, %v1498
  %v1500 = vpop.f32.mrf.mxu0
  %v1501 = vpop.f32.mrf.mxu0
  %v1502 = vadd.f32 0.0, %v1501
  %v1503 = vpop.f32.mrf.mxu0
  %1504 = vmatprep.mubr.bf16.mxu0 0
  %1505 = vmatmul.mubr.bf16.gmra.mxu0 %v1387
  %v1506 = vpop.f32.mrf.mxu0
  %v1507 = vadd.f32 0.0, %v1506
  %v1508 = vpop.f32.mrf.mxu0
  %v1509 = vpop.f32.mrf.mxu0
  %v1510 = vadd.f32 0.0, %v1509
  %v1511 = vpop.f32.mrf.mxu0
  %1512 = vmatprep.mubr.bf16.mxu0 0
  %1513 = vmatmul.mubr.bf16.gmra.mxu0 %v1390
  %v1514 = vpop.f32.mrf.mxu0
  %v1515 = vadd.f32 0.0, %v1514
  %v1516 = vpop.f32.mrf.mxu0
  %v1517 = vpop.f32.mrf.mxu0
  %v1518 = vadd.f32 0.0, %v1517
  %v1519 = vpop.f32.mrf.mxu0
  %1520 = vdwg.mxu0
  %v1521 = vadd.f32 %v1334, %v1427
  %v1522 = vadd.f32 %v1335, %v1430
  %v1523 = vadd.f32 %v1336, %v1435
  %v1524 = vadd.f32 %v1337, %v1438
  %v1525 = vadd.f32 %v1338, %v1443
  %v1526 = vadd.f32 %v1339, %v1446
  %v1527 = vadd.f32 %v1340, %v1451
  %v1528 = vadd.f32 %v1341, %v1454
  %v1529 = vadd.f32 %v1342, %v1459
  %v1530 = vadd.f32 %v1343, %v1462
  %v1531 = vadd.f32 %v1344, %v1467
  %v1532 = vadd.f32 %v1345, %v1470
  %v1533 = vadd.f32 %v1346, %v1475
  %v1534 = vadd.f32 %v1347, %v1478
  %v1535 = vadd.f32 %v1348, %v1483
  %v1536 = vadd.f32 %v1349, %v1486
  %v1537 = vadd.f32 %v1350, %v1491
  %v1538 = vadd.f32 %v1351, %v1494
  %v1539 = vadd.f32 %v1352, %v1499
  %v1540 = vadd.f32 %v1353, %v1502
  %v1541 = vadd.f32 %v1354, %v1507
  %v1542 = vadd.f32 %v1355, %v1510
  %v1543 = vadd.f32 %v1356, %v1515
  %v1544 = vadd.f32 %v1357, %v1518
  %v1545 = vmax.f32 %v1521, %v1527
  %v1546 = vmax.f32 %v1522, %v1528
  %v1547 = vmax.f32 %v1523, %v1529
  %v1548 = vmax.f32 %v1524, %v1530
  %v1549 = vmax.f32 %v1525, %v1531
  %v1550 = vmax.f32 %v1526, %v1532
  %v1551 = vmax.f32 %v1533, %v1539
  %v1552 = vmax.f32 %v1534, %v1540
  %v1553 = vmax.f32 %v1535, %v1541
  %v1554 = vmax.f32 %v1536, %v1542
  %v1555 = vmax.f32 %v1537, %v1543
  %v1556 = vmax.f32 %v1538, %v1544
  %v1557 = vmax.f32 %v1545, %v1551
  %v1558 = vmax.f32 %v1546, %v1552
  %v1559 = vmax.f32 %v1547, %v1553
  %v1560 = vmax.f32 %v1548, %v1554
  %v1561 = vmax.f32 %v1549, %v1555
  %v1562 = vmax.f32 %v1550, %v1556
  %v1563 = vld [vmem:[%s6] sm:$0x1]
  %v1565 = vlaneseq
  %v1566 = vshrl.u32 %v1565, 7
  %v1567 = vsub.s32 0, %v1566
  %v1568 = vrot.slane %v1563, %v1567
  %v1570 = vadd.f32 %v1557, %v1568
  %v1571 = vadd.f32 %v1558, %v1568
  %v1572 = vadd.f32 %v1559, %v1568
  %v1573 = vadd.f32 %v1560, %v1568
  %v1574 = vadd.f32 %v1561, %v1568
  %v1575 = vadd.f32 %v1562, %v1568
  %v1576 = vmax.f32 %v1570, 0.0
  %v1577 = vmax.f32 %v1571, 0.0
  %v1578 = vmax.f32 %v1572, 0.0
  %v1579 = vmax.f32 %v1573, 0.0
  %v1580 = vmax.f32 %v1574, 0.0
  %v1581 = vmax.f32 %v1575, 0.0
  %v1582 = vld [vmem:[%s7] sm:$0x1]
  %v1584 = vlaneseq
  %v1585 = vshrl.u32 %v1584, 7
  %v1586 = vsub.s32 0, %v1585
  %v1587 = vrot.slane %v1582, %v1586
  %v1589 = vmul.f32 %v1576, %v1587
  %v1590 = vmul.f32 %v1577, %v1587
  %v1591 = vmul.f32 %v1578, %v1587
  %v1592 = vmul.f32 %v1579, %v1587
  %v1593 = vmul.f32 %v1580, %v1587
  %v1594 = vmul.f32 %v1581, %v1587
  %v1595 = vld [vmem:[%s8] sm:$0x1]
  %v1597 = vlaneseq
  %v1598 = vshrl.u32 %v1597, 7
  %v1599 = vsub.s32 0, %v1598
  %v1600 = vrot.slane %v1595, %v1599
  %v1602 = vadd.f32 %v1589, %v1600
  %v1603 = vadd.f32 %v1590, %v1600
  %v1604 = vadd.f32 %v1591, %v1600
  %v1605 = vadd.f32 %v1592, %v1600
  %v1606 = vadd.f32 %v1593, %v1600
  %v1607 = vadd.f32 %v1594, %v1600
  %vm1608 = vcmask 523264
  %1609 = vst.msk [vmem:[%s9] sm:$0xff] %vm1608, %v1602
  %1610 = vst.msk [vmem:[%s9 + $0x8] sm:$0xff] %vm1608, %v1603
  %1611 = vst.msk [vmem:[%s9 + $0x10] sm:$0xff] %vm1608, %v1604
  %1612 = vst.msk [vmem:[%s9 + $0x18] sm:$0xff] %vm1608, %v1605
  %1613 = vst.msk [vmem:[%s9 + $0x20] sm:$0xff] %vm1608, %v1606
  %1614 = vst.msk [vmem:[%s9 + $0x28] sm:$0xff] %vm1608, %v1607
  // Predicated region
  $region38: #{convnet_controller_forward.1} parent=0 // pred_check
    _
  $region39: #{convnet_controller_forward.1} parent=0 // pred_check_branch
    %1616 = sbr.rel (0) target = $region41
  $region40: #{convnet_controller_forward.1} parent=0 // pred_region
    _
  $region41: #{convnet_controller_forward.1} parent=0 // pred_fallthru
    _
  // Predicated region
  $region42: #{convnet_controller_forward.1} parent=0 // pred_check
    _
  $region43: #{convnet_controller_forward.1} parent=0 // pred_check_branch
    %1618 = sbr.rel (0) target = $region45
  $region44: #{convnet_controller_forward.1} parent=0 // pred_region
    _
  $region45: #{convnet_controller_forward.1} parent=0 // pred_fallthru
    _

</llo_original>
